<compile_context>
chip_gen: v7x
topology: tpu7x:2x2x1
jax: 0.10.0
libtpu: 0.0.40
codegen_flags: <defaults>
</compile_context>

<pallas_src>
import math
from functools import partial

import jax
import jax.numpy as jnp
from jax.experimental import pallas as pl
from jax.experimental.pallas import tpu as pltpu


# --------------------------------------------------------------------------------------
# Generation-aware compile-time knobs
# --------------------------------------------------------------------------------------

def _vmem_capacity():
    try:
        return int(pltpu.get_tpu_info().vmem_capacity_bytes)
    except Exception:
        return 64 * 2**20  # conservative (v7x-like) fallback


_VMEM_CAP = _vmem_capacity()
_VMEM_LIMIT = int(min(96 * 2**20, (_VMEM_CAP * 3) // 4))

# Matmul tile targets (multiples of 128 for the MXU).  v5e/v6e have 128 MiB VMEM -> big
# tiles; v7x has 64 MiB -> keep the smaller footprint.
if _VMEM_CAP >= 100 * 2**20:
    _TM, _TN, _TK = 512, 512, 1024
else:
    _TM, _TN, _TK = 256, 256, 512


def _cparams(dims):
    return pltpu.CompilerParams(dimension_semantics=dims, vmem_limit_bytes=_VMEM_LIMIT)


def _round_up(x, m):
    return -(-x // m) * m


def _pick_tile(dim, target, align):
    """Full dim if it fits; otherwise prefer an aligned divisor (no boundary block),
    falling back to `target` with a padded boundary block."""
    if dim <= target:
        return dim
    t = target - target % align
    while t >= align:
        if dim % t == 0:
            break
        t -= align
    if t >= align and 2 * t >= target:
        return t
    return target


def _divisor_k_tile(K, target):
    """Aligned divisor of K (clean accumulation over the K grid axis) or None."""
    for step in (128, 8):
        t = target - target % step
        while t >= step:
            if K % t == 0:
                return t
            t -= step
    return None


# --------------------------------------------------------------------------------------
# Fused (LayerNorm?) -> matmul -> (+bias) -> (GELU?) -> (+residual?) kernel
# --------------------------------------------------------------------------------------

def _make_linear_kernel(*, has_ln, has_bias, has_res, act, eps, nk):
    def kernel(*refs):
        it = iter(refs)
        x_ref = next(it)
        w_ref = next(it)
        lnw_ref = next(it) if has_ln else None
        lnb_ref = next(it) if has_ln else None
        b_ref = next(it) if has_bias else None
        res_ref = next(it) if has_res else None
        o_ref = next(it)
        xn_ref = next(it) if has_ln else None
        acc_ref = next(it) if nk > 1 else None

        if has_ln:
            # LayerNorm fused into the matmul prologue; computed once per row tile
            # (j == 0) and cached in VMEM scratch for the remaining column tiles.
            @pl.when(pl.program_id(1) == 0)
            def _():
                xf = x_ref[...].astype(jnp.float32)
                mu = jnp.mean(xf, axis=-1, keepdims=True)
                xc = xf - mu
                var = jnp.mean(xc * xc, axis=-1, keepdims=True)
                xn = xc * jax.lax.rsqrt(var + eps)
                xn = xn * lnw_ref[...].astype(jnp.float32) + lnb_ref[...].astype(jnp.float32)
                xn_ref[...] = xn.astype(jnp.bfloat16)

            x = xn_ref[...]
        else:
            x = x_ref[...]
            if x.dtype != jnp.bfloat16:
                x = x.astype(jnp.bfloat16)

        w = w_ref[...]
        if w.dtype != jnp.bfloat16:
            w = w.astype(jnp.bfloat16)

        def epilogue(y):
            if has_bias:
                y = y + b_ref[...].astype(jnp.float32)
            if act == "gelu":  # exact erf GELU, matching torch.nn.GELU() default
                y = 0.5 * y * (1.0 + jax.lax.erf(y * (1.0 / math.sqrt(2.0))))
            if has_res:  # residual add fused into the epilogue
                y = y + res_ref[...].astype(jnp.float32)
            o_ref[...] = y.astype(o_ref.dtype)

        if nk == 1:
            epilogue(jnp.dot(x, w, preferred_element_type=jnp.float32))
        else:
            @pl.when(pl.program_id(2) == 0)
            def _():
                acc_ref[...] = jnp.zeros_like(acc_ref)

            acc_ref[...] += jnp.dot(x, w, preferred_element_type=jnp.float32)

            @pl.when(pl.program_id(2) == nk - 1)
            def _():
                epilogue(acc_ref[...])

    return kernel


def linear(x2d, w, b=None, *, act=None, ln=None, eps=1e-6, res=None,
           out_dtype=jnp.bfloat16):
    """y = act(LN(x) @ w + b) + res, with every optional piece fused into one kernel.

    x2d: (M, K).  w: (K, N) (bf16 or f32).  b: (N,) or None.
    ln : (gamma, beta) of shape (K,) -> LayerNorm over K (forces a full-K tile).
    res: (M, N) residual added after the activation.  Output dtype = out_dtype.
    """
    assert act in (None, "gelu")
    M, K = x2d.shape
    Kw, N = w.shape
    assert Kw == K
    has_ln = ln is not None
    has_bias = b is not None
    has_res = res is not None

    tm = _pick_tile(M, _TM, 8)
    tn = _pick_tile(N, _TN, 128)
    if has_ln or K <= _TK:
        tk, Kp = K, K            # LayerNorm needs the whole feature row in one tile
    else:
        tk = _divisor_k_tile(K, _TK)
        if tk is None:           # zero-pad K (only path where padding is required)
            tk = _TK
            Kp = _round_up(K, tk)
        else:
            Kp = K
    nk = Kp // tk
    assert not (has_ln and nk > 1)

    xp = x2d if Kp == K else jnp.pad(x2d, ((0, 0), (0, Kp - K)))
    wp = w if Kp == K else jnp.pad(w, ((0, Kp - K), (0, 0)))

    operands = [xp, wp]
    in_specs = [pl.BlockSpec((tm, tk), lambda i, j, k: (i, k)),
                pl.BlockSpec((tk, tn), lambda i, j, k: (k, j))]
    if has_ln:
        g, be = ln
        operands += [g.reshape(1, K).astype(jnp.float32),
                     be.reshape(1, K).astype(jnp.float32)]
        in_specs += [pl.BlockSpec((1, K), lambda i, j, k: (0, 0))] * 2
    if has_bias:
        operands.append(b.reshape(1, N).astype(jnp.float32))
        in_specs.append(pl.BlockSpec((1, tn), lambda i, j, k: (0, j)))
    if has_res:
        operands.append(res)
        in_specs.append(pl.BlockSpec((tm, tn), lambda i, j, k: (i, j)))

    scratch = []
    if has_ln:
        scratch.append(pltpu.VMEM((tm, K), jnp.bfloat16))       # cached LN(x)
    if nk > 1:
        scratch.append(pltpu.VMEM((tm, tn), jnp.float32))        # f32 accumulator

    # The j axis must stay sequential when the LN(x) scratch is reused across it.
    dims = ("parallel", "arbitrary" if has_ln else "parallel", "arbitrary")

    return pl.pallas_call(
        _make_linear_kernel(has_ln=has_ln, has_bias=has_bias, has_res=has_res,
                            act=act, eps=eps, nk=nk),
        out_shape=jax.ShapeDtypeStruct((M, N), out_dtype),
        grid=(pl.cdiv(M, tm), pl.cdiv(N, tn), nk),
        in_specs=in_specs,
        out_specs=pl.BlockSpec((tm, tn), lambda i, j, k: (i, j)),
        scratch_shapes=scratch,
        compiler_params=_cparams(dims),
    )(*operands)


# --------------------------------------------------------------------------------------
# Fused LayerNorm -> qkv matmul producing head-major q / k / v (scale folded into W_q)
# --------------------------------------------------------------------------------------

def _head_group(num_heads, hd):
    """Heads per output-column tile so the qkv matmul width stays MXU friendly."""
    for g in range(1, num_heads + 1):
        if num_heads % g == 0 and (g * 3 * hd) % 128 == 0:
            return g
    for g in range(1, num_heads + 1):
        if num_heads % g == 0 and g * 3 * hd >= 128:
            return g
    return num_heads


def _prep_qkv_weight(w, num_heads):
    """w: (D, 3D) in x @ w layout, columns = [q | k | v] head-minor.
    Returns (H/hg, D, hg*3*hd) bf16: head-major [q_h|k_h|v_h] groups with the softmax
    scale (head_dim ** -0.5, qk_scale=None default) folded into the q columns."""
    D = w.shape[0]
    hd = D // num_heads
    scale = hd ** (-0.5)
    w = w.astype(jnp.float32)
    wq = w[:, 0 * D:1 * D].reshape(D, num_heads, hd) * scale
    wk = w[:, 1 * D:2 * D].reshape(D, num_heads, hd)
    wv = w[:, 2 * D:3 * D].reshape(D, num_heads, hd)
    w_hm = jnp.concatenate([wq, wk, wv], axis=-1)            # (D, H, 3hd)
    w_hm = jnp.transpose(w_hm, (1, 0, 2))                     # (H, D, 3hd)
    hg = _head_group(num_heads, hd)
    w_hm = w_hm.reshape(num_heads // hg, hg, D, 3 * hd)
    w_hm = jnp.transpose(w_hm, (0, 2, 1, 3)).reshape(num_heads // hg, D, hg * 3 * hd)
    return w_hm.astype(jnp.bfloat16)


def _make_qkv_kernel(*, eps, hd, hg):
    def kernel(x_ref, w_ref, gam_ref, bet_ref, q_ref, k_ref, v_ref, xn_ref):
        @pl.when(pl.program_id(1) == 0)
        def _():
            xf = x_ref[...].astype(jnp.float32)
            mu = jnp.mean(xf, axis=-1, keepdims=True)
            xc = xf - mu
            var = jnp.mean(xc * xc, axis=-1, keepdims=True)
            xn = xc * jax.lax.rsqrt(var + eps)
            xn = xn * gam_ref[...].astype(jnp.float32) + bet_ref[...].astype(jnp.float32)
            xn_ref[...] = xn.astype(jnp.bfloat16)

        w = w_ref[0]
        if w.dtype != jnp.bfloat16:
            w = w.astype(jnp.bfloat16)
        y = jnp.dot(xn_ref[...], w, preferred_element_type=jnp.float32)  # (tm, hg*3hd)
        for g in range(hg):  # per-head split done once in the matmul epilogue
            base = g * 3 * hd
            q_ref[g, :, :] = y[:, base:base + hd].astype(q_ref.dtype)
            k_ref[g, :, :] = y[:, base + hd:base + 2 * hd].astype(k_ref.dtype)
            v_ref[g, :, :] = y[:, base + 2 * hd:base + 3 * hd].astype(v_ref.dtype)

    return kernel


def qkv_project(x2d, w3, gamma, beta, *, eps, hd):
    """x2d: (M, K).  w3: (H/hg, K, hg*3*hd) head-grouped qkv weight (bf16, scale folded).
    Returns q, k, v each of shape (H, M, hd) in bf16 (head-major, no qkv bias)."""
    M, K = x2d.shape
    HG, Kw, wcols = w3.shape
    assert Kw == K
    hg = wcols // (3 * hd)
    H = HG * hg
    tm = _pick_tile(M, _TM, 8)

    out_sds = jax.ShapeDtypeStruct((H, M, hd), jnp.bfloat16)
    out_spec = pl.BlockSpec((hg, tm, hd), lambda i, j: (j, i, 0))

    return pl.pallas_call(
        _make_qkv_kernel(eps=eps, hd=hd, hg=hg),
        out_shape=(out_sds, out_sds, out_sds),
        grid=(pl.cdiv(M, tm), HG),
        in_specs=[pl.BlockSpec((tm, K), lambda i, j: (i, 0)),
                  pl.BlockSpec((1, K, wcols), lambda i, j: (j, 0, 0)),
                  pl.BlockSpec((1, K), lambda i, j: (0, 0)),
                  pl.BlockSpec((1, K), lambda i, j: (0, 0))],
        out_specs=(out_spec, out_spec, out_spec),
        scratch_shapes=[pltpu.VMEM((tm, K), jnp.bfloat16)],
        compiler_params=_cparams(("parallel", "arbitrary")),
    )(x2d, w3,
      gamma.reshape(1, K).astype(jnp.float32),
      beta.reshape(1, K).astype(jnp.float32))


# --------------------------------------------------------------------------------------
# Attention core: (batch-tile, head) grid, contiguous per-head blocks, bf16 in / bf16 out
# --------------------------------------------------------------------------------------

def _attn_core_kernel(q_ref, k_ref, v_ref, o_ref):
    q = q_ref[0]                        # (bt, N, hd) bf16, softmax scale already in W_q
    k = k_ref[0]
    v = v_ref[0]
    s = jnp.einsum("bqd,bkd->bqk", q, k, preferred_element_type=jnp.float32)
    m = jnp.max(s, axis=-1, keepdims=True)
    p = jnp.exp(s - m)
    l = jnp.sum(p, axis=-1, keepdims=True)
    o = jnp.einsum("bqk,bkd->bqd", p.astype(v.dtype), v,
                   preferred_element_type=jnp.float32)
    o_ref[0, :, :, :] = (o * pl.reciprocal(l, approx=True)).astype(o_ref.dtype)


def _attn_batch_tile(Bb, N, hd):
    # Per batch element: double-buffered q/k/v/out bf16 blocks + f32 scores + bf16 probs
    # + f32 output temporary.  Budget derived from the generation's VMEM limit.
    per_b = 8 * N * hd * 2 + N * N * 6 + N * hd * 4
    budget = max(2 * 2**20, int(0.3 * _VMEM_LIMIT))
    target = int(max(1, min(Bb, budget // max(per_b, 1))))
    for d in range(min(target, Bb), 0, -1):
        if Bb % d == 0:
            return d
    return 1


def attn_core(q, k, v):
    """q, k, v: (H, Bb, N, hd) bf16 -> (H, Bb, N, hd) bf16."""
    H, Bb, N, hd = q.shape
    bt = _attn_batch_tile(Bb, N, hd)
    spec = pl.BlockSpec((1, bt, N, hd), lambda i, h: (h, i, 0, 0))
    return pl.pallas_call(
        _attn_core_kernel,
        out_shape=jax.ShapeDtypeStruct((H, Bb, N, hd), jnp.bfloat16),
        grid=(Bb // bt, H),
        in_specs=[spec, spec, spec],
        out_specs=spec,
        compiler_params=_cparams(("parallel", "parallel")),
    )(q, k, v)


# --------------------------------------------------------------------------------------
# Stand-alone LayerNorm (only used for the tiny final cls-token normalization)
# --------------------------------------------------------------------------------------

def _layernorm_kernel(x_ref, w_ref, b_ref, o_ref, *, eps):
    x = x_ref[...].astype(jnp.float32)
    mu = jnp.mean(x, axis=-1, keepdims=True)
    xc = x - mu
    var = jnp.mean(xc * xc, axis=-1, keepdims=True)
    y = xc * jax.lax.rsqrt(var + eps)
    o_ref[...] = (y * w_ref[...] + b_ref[...]).astype(o_ref.dtype)


def layernorm(x2d, w, b, eps):
    M, D = x2d.shape
    tm = _pick_tile(M, _TM, 8)
    return pl.pallas_call(
        partial(_layernorm_kernel, eps=eps),
        out_shape=jax.ShapeDtypeStruct((M, D), jnp.float32),
        grid=(pl.cdiv(M, tm),),
        in_specs=[pl.BlockSpec((tm, D), lambda i: (i, 0)),
                  pl.BlockSpec((1, D), lambda i: (0, 0)),
                  pl.BlockSpec((1, D), lambda i: (0, 0))],
        out_specs=pl.BlockSpec((tm, D), lambda i: (i, 0)),
        compiler_params=_cparams(("parallel",)),
    )(x2d, w.reshape(1, D).astype(jnp.float32), b.reshape(1, D).astype(jnp.float32))


# --------------------------------------------------------------------------------------
# Model pieces (glue in plain JAX, hot paths via the fused kernels above)
# --------------------------------------------------------------------------------------

def attention(x3d, ap, num_heads, *, ln_w, ln_b, ln_eps):
    """Multi-head self-attention (with_qkv=True, qkv_bias=False) with the preceding
    LayerNorm fused into the qkv projection.  x3d: (Bb, N, C) raw tokens (bf16)."""
    Bb, N, C = x3d.shape
    hd = C // num_heads
    x2d = x3d.reshape(Bb * N, C)
    q, k, v = qkv_project(x2d, ap["wqkv"], ln_w, ln_b, eps=ln_eps, hd=hd)
    q = q.reshape(num_heads, Bb, N, hd)
    k = k.reshape(num_heads, Bb, N, hd)
    v = v.reshape(num_heads, Bb, N, hd)
    o = attn_core(q, k, v)                                       # (H, Bb, N, hd) bf16
    o2d = jnp.transpose(o, (1, 2, 0, 3)).reshape(Bb * N, C)      # bf16 head concat
    y = linear(o2d, ap["wproj"], ap["bproj"])                    # (Bb*N, C) bf16
    return y.reshape(Bb, N, C)


def block_forward(x, bp, B, T, Wp, num_heads):
    """Divided space-time block, faithful to the PyTorch Block.forward.  x: bf16."""
    D = x.shape[2]
    Np_ = (x.shape[1] - 1) // T
    Hs = Np_ // Wp

    # ---- temporal attention on spatial tokens (token order (h w t)) ----
    xt0 = x[:, 1:, :]                                            # (B, HWT, D)
    xt_r = xt0.reshape(B * Hs * Wp, T, D)                        # free reshape: (b h w) t m
    # temporal_norm1 uses the default nn.LayerNorm eps (1e-5) in the reference module
    att_t = attention(xt_r, bp["tattn"], num_heads,
                      ln_w=bp["tn1_w"], ln_b=bp["tn1_b"], ln_eps=1e-5)
    # temporal_fc with the residual (xt0) fused into the matmul epilogue
    xt_new = linear(att_t.reshape(-1, D), bp["tfc_w"], bp["tfc_b"],
                    res=xt0.reshape(-1, D)).reshape(B, Hs * Wp * T, D)

    # ---- spatial attention (on the *original* tokens, as in the reference code) ----
    init_cls = x[:, 0:1, :]                                      # (B, 1, D)
    cls_tok = jnp.broadcast_to(init_cls, (B, T, D)).reshape(B * T, 1, D)
    xs = x[:, 1:, :].reshape(B, Hs, Wp, T, D).transpose(0, 3, 1, 2, 4)
    xs = xs.reshape(B * T, Hs * Wp, D)
    xs = jnp.concatenate([cls_tok, xs], axis=1)                  # (B*T, 1+HW, D)
    res_s = attention(xs, bp["attn"], num_heads,
                      ln_w=bp["n1_w"], ln_b=bp["n1_b"], ln_eps=1e-6)
    cls_out = res_s[:, 0, :].reshape(B, T, D).mean(axis=1, keepdims=True)   # (B, 1, D)
    res_sp = res_s[:, 1:, :].reshape(B, T, Hs, Wp, D).transpose(0, 2, 3, 1, 4)
    res_sp = res_sp.reshape(B, Hs * Wp * T, D)

    x_new = jnp.concatenate([init_cls + cls_out, xt_new + res_sp], axis=1)  # (B, 1+HWT, D)

    # ---- MLP: norm2 fused into fc1 (+GELU), residual fused into fc2 ----
    x2d = x_new.reshape(-1, D)
    h1 = linear(x2d, bp["fc1_w"], bp["fc1_b"], act="gelu",
                ln=(bp["n2_w"], bp["n2_b"]), eps=1e-6)
    y2d = linear(h1, bp["fc2_w"], bp["fc2_b"], res=x2d)
    return y2d.reshape(x_new.shape)


def vit_forward(x, params, *, patch_size, num_heads):
    """x: (B, C, T, H, W) float32.  Returns (logits, cls_features)."""
    B, C, T, H, W = x.shape
    D = params["cls_token"].shape[-1]
    ph = pw = patch_size
    nh, nw = H // ph, W // pw
    Np_ = nh * nw
    BT = B * T

    # --- PatchEmbed: stride==kernel conv == patch extraction + Pallas matmul ---
    xr = x.transpose(0, 2, 1, 3, 4).reshape(BT, C, H, W)                     # (b t) c h w
    patches = xr.reshape(BT, C, nh, ph, nw, pw).transpose(0, 2, 4, 1, 3, 5)
    patches = patches.reshape(BT * Np_, C * ph * pw)
    emb = linear(patches, params["patch_w"], params["patch_b"],
                 out_dtype=jnp.float32).reshape(BT, Np_, D)
    Wp = nw

    # --- cls token + positional embedding (one-time, kept in f32) ---
    cls = jnp.broadcast_to(params["cls_token"], (BT, 1, D))
    xtok = jnp.concatenate([cls, emb], axis=1) + params["pos_embed"]         # (BT, 1+Np, D)

    # --- time embedding ---
    cls_tokens = xtok[:B, 0, :][:, None, :]                                  # (B, 1, D)
    xb = xtok[:, 1:].reshape(B, T, Np_, D).transpose(0, 2, 1, 3).reshape(B * Np_, T, D)
    xb = xb + params["time_embed"]                                           # (1, T, D)
    xb = xb.reshape(B, Np_ * T, D)
    xcur = jnp.concatenate([cls_tokens, xb], axis=1).astype(jnp.bfloat16)    # (B, 1+Np*T, D)

    # --- transformer blocks (bf16 residual stream) ---
    for bp in params["blocks"]:
        xcur = block_forward(xcur, bp, B, T, Wp, num_heads)

    # --- final norm + cls pooling + head ---
    # LayerNorm is per-token, so norming only the pooled cls row equals norm-then-pool.
    # Final norm uses the default nn.LayerNorm eps (1e-5), as in the reference module.
    x1 = layernorm(xcur[:, 0, :], params["norm_w"], params["norm_b"], eps=1e-5)   # (B, D)
    logits = linear(x1, params["head_w"], params["head_b"], out_dtype=jnp.float32)
    return logits, x1


# --------------------------------------------------------------------------------------
# Deterministic synthetic parameter initialization (shapes follow the module __init__)
# --------------------------------------------------------------------------------------

def init_params(key, *, in_chans, patch_size, embed_dim, depth, num_heads,
                mlp_ratio, num_frames, num_patches, num_classes):
    std = 0.02
    keys = iter(jax.random.split(key, 1024))

    def tn(shape, dtype=jnp.float32):
        return (std * jax.random.normal(next(keys), shape, dtype=jnp.float32)).astype(dtype)

    D = embed_dim
    hidden = int(D * mlp_ratio)
    kdim = in_chans * patch_size * patch_size
    wdt = jnp.bfloat16  # matmul weights stored in bf16 for the MXU / HBM traffic

    def attn_params():
        return {
            # qkv_bias=False (VisionTransformer default); head-major + scale-folded layout
            "wqkv": _prep_qkv_weight(tn((D, 3 * D)), num_heads),
            "wproj": tn((D, D), wdt),
            "bproj": jnp.zeros((D,), jnp.float32),
        }

    blocks = []
    for i in range(depth):
        blocks.append({
            "n1_w": jnp.ones((D,), jnp.float32), "n1_b": jnp.zeros((D,), jnp.float32),
            "tn1_w": jnp.ones((D,), jnp.float32), "tn1_b": jnp.zeros((D,), jnp.float32),
            "n2_w": jnp.ones((D,), jnp.float32), "n2_b": jnp.zeros((D,), jnp.float32),
            "attn": attn_params(),
            "tattn": attn_params(),
            # temporal_fc is zero-initialized for blocks i > 0, as in the module __init__
            "tfc_w": tn((D, D), wdt) if i == 0 else jnp.zeros((D, D), wdt),
            "tfc_b": jnp.zeros((D,), jnp.float32),
            "fc1_w": tn((D, hidden), wdt), "fc1_b": jnp.zeros((hidden,), jnp.float32),
            "fc2_w": tn((hidden, D), wdt), "fc2_b": jnp.zeros((D,), jnp.float32),
        })

    return {
        "patch_w": tn((kdim, D), wdt),     # conv (D, C, ph, pw) flattened + transposed
        "patch_b": jnp.zeros((D,), jnp.float32),
        "cls_token": tn((1, 1, D)),
        "pos_embed": tn((1, num_patches + 1, D)),
        "time_embed": jnp.zeros((1, num_frames, D), jnp.float32),
        "blocks": blocks,
        "norm_w": jnp.ones((D,), jnp.float32), "norm_b": jnp.zeros((D,), jnp.float32),
        "head_w": tn((D, num_classes), wdt),
        "head_b": jnp.zeros((num_classes,), jnp.float32),
    }


# --------------------------------------------------------------------------------------
# Main
# --------------------------------------------------------------------------------------

if __name__ == "__main__":
    # Small config consistent with the module: img 16, patch 8 -> 4 patches/frame
    B, C, T = 2, 3, 2
    IMG, PATCH = 16, 8
    EMBED, DEPTH, HEADS, MLP_RATIO = 32, 2, 4, 4.0
    NUM_CLASSES = 10
    NUM_PATCHES = (IMG // PATCH) * (IMG // PATCH)

    key = jax.random.PRNGKey(0)
    kx, kp = jax.random.split(key)
    x = jax.random.normal(kx, (B, C, T, IMG, IMG), dtype=jnp.float32)

    params = init_params(
        kp, in_chans=C, patch_size=PATCH, embed_dim=EMBED, depth=DEPTH,
        num_heads=HEADS, mlp_ratio=MLP_RATIO, num_frames=T,
        num_patches=NUM_PATCHES, num_classes=NUM_CLASSES,
    )

    # Sanity-exercise the K-tiled / K-padded / boundary-block accumulator path of the
    # linear kernel (the tiny ViT config below only uses single-K-tile blocks).
    xs_t = jax.random.normal(jax.random.PRNGKey(1), (300, 1100), dtype=jnp.float32)
    ws_t = jax.random.normal(jax.random.PRNGKey(2), (1100, 200), dtype=jnp.float32)
    y_t = linear(xs_t, ws_t, out_dtype=jnp.float32)
    ref_t = xs_t @ ws_t
    rel_err = jnp.max(jnp.abs(y_t - ref_t)) / jnp.max(jnp.abs(ref_t))
    assert float(rel_err) < 5e-2, f"tiled matmul mismatch: rel_err={float(rel_err)}"

    fwd = jax.jit(partial(vit_forward, patch_size=PATCH, num_heads=HEADS))
    logits, cls_feat = fwd(x, params)
    jax.block_until_ready(logits)
    jax.block_until_ready(cls_feat)

    assert logits.shape == (B, NUM_CLASSES)
    assert cls_feat.shape == (B, EMBED)
    # TODO(synk): relprop / attention-rollout explanation paths (backward hooks, saved
    # attention maps) have no forward-kernel equivalent and are intentionally omitted.
    print("KERNEL_OK")
</pallas_src>

<mosaic_0001>
module attributes {stable_mosaic.version = 11 : i64} {
  func.func @kernel(%arg0: i32, %arg1: i32, %arg2: i32, %arg3: memref<256x512xf32, #tpu.memory_space<vmem>>, %arg4: memref<512x200xf32, #tpu.memory_space<vmem>>, %arg5: memref<256x200xf32, #tpu.memory_space<vmem>>, %arg6: memref<256x200xf32, #tpu.memory_space<vmem>>) attributes {dimension_semantics = [#tpu.dimension_semantics<parallel>, #tpu.dimension_semantics<parallel>, #tpu.dimension_semantics<arbitrary>], iteration_bounds = array<i64: 2, 1, 3>, scalar_prefetch = 0 : i64, scratch_operands = 1 : i64, tpu.core_type = #tpu.core_type<tc>, window_params = [{transform_indices = @transform_0, window_bounds = array<i64: 256, 512>}, {transform_indices = @transform_1, window_bounds = array<i64: 512, 200>}, {transform_indices = @transform_2, window_bounds = array<i64: 256, 200>}]} {
    %c0 = arith.constant 0 : index
    %c0_0 = arith.constant 0 : index
    %0 = vector.load %arg3[%c0, %c0_0] : memref<256x512xf32, #tpu.memory_space<vmem>>, vector<256x512xf32>
    %1 = arith.truncf %0 : vector<256x512xf32> to vector<256x512xbf16>
    %c0_1 = arith.constant 0 : index
    %c0_2 = arith.constant 0 : index
    %2 = vector.load %arg4[%c0_1, %c0_2] : memref<512x200xf32, #tpu.memory_space<vmem>>, vector<512x200xf32>
    %3 = arith.truncf %2 : vector<512x200xf32> to vector<512x200xbf16>
    %c0_i32 = arith.constant 0 : i32
    %4 = arith.cmpi eq, %arg2, %c0_i32 : i32
    %5 = arith.extui %4 : i1 to i32
    %c0_i32_3 = arith.constant 0 : i32
    %6 = arith.cmpi ne, %5, %c0_i32_3 : i32
    scf.if %6 {
      %cst_9 = arith.constant 0.000000e+00 : f32
      %14 = vector.broadcast %cst_9 : f32 to vector<256x200xf32>
      %c0_10 = arith.constant 0 : index
      %c0_11 = arith.constant 0 : index
      %15 = vector.load %arg6[%c0_10, %c0_11] : memref<256x200xf32, #tpu.memory_space<vmem>>, vector<256x200xf32>
      tpu.vector_store %arg6[%c0_10, %c0_11], %14 {strides = array<i32>} : memref<256x200xf32, #tpu.memory_space<vmem>>, vector<256x200xf32>,
    } else {
    }
    %c0_4 = arith.constant 0 : index
    %c0_5 = arith.constant 0 : index
    %7 = vector.load %arg6[%c0_4, %c0_5] : memref<256x200xf32, #tpu.memory_space<vmem>>, vector<256x200xf32>
    %cst = arith.constant dense<0.000000e+00> : vector<256x200xf32>
    %8 = tpu.matmul %1, %3, %cst {dimension_numbers = #tpu.dot_dimension_numbers<[1], [0], [0], [1], [0, 0, 1, 1], [], []>} : vector<256x512xbf16>, vector<512x200xbf16>, vector<256x200xf32> -> vector<256x200xf32>
    %9 = arith.addf %7, %8 : vector<256x200xf32>
    %c0_6 = arith.constant 0 : index
    %c0_7 = arith.constant 0 : index
    %10 = vector.load %arg6[%c0_6, %c0_7] : memref<256x200xf32, #tpu.memory_space<vmem>>, vector<256x200xf32>
    tpu.vector_store %arg6[%c0_6, %c0_7], %9 {strides = array<i32>} : memref<256x200xf32, #tpu.memory_space<vmem>>, vector<256x200xf32>,
    %c2_i32 = arith.constant 2 : i32
    %11 = arith.cmpi eq, %arg2, %c2_i32 : i32
    %12 = arith.extui %11 : i1 to i32
    %c0_i32_8 = arith.constant 0 : i32
    %13 = arith.cmpi ne, %12, %c0_i32_8 : i32
    scf.if %13 {
      %c0_9 = arith.constant 0 : index
      %c0_10 = arith.constant 0 : index
      %14 = vector.load %arg6[%c0_9, %c0_10] : memref<256x200xf32, #tpu.memory_space<vmem>>, vector<256x200xf32>
      %c0_11 = arith.constant 0 : index
      %c0_12 = arith.constant 0 : index
      %15 = vector.load %arg5[%c0_11, %c0_12] : memref<256x200xf32, #tpu.memory_space<vmem>>, vector<256x200xf32>
      tpu.vector_store %arg5[%c0_11, %c0_12], %14 {strides = array<i32>} : memref<256x200xf32, #tpu.memory_space<vmem>>, vector<256x200xf32>,
    } else {
    }
    return
  }
  func.func @transform_0(%arg0: i32, %arg1: i32, %arg2: i32) -> (i32, i32) {
    %c0_i32 = arith.constant 0 : i32
    return %arg0, %arg2 : i32, i32
  }
  func.func @transform_1(%arg0: i32, %arg1: i32, %arg2: i32) -> (i32, i32) {
    %c0_i32 = arith.constant 0 : i32
    return %arg2, %arg1 : i32, i32
  }
  func.func @transform_2(%arg0: i32, %arg1: i32, %arg2: i32) -> (i32, i32) {
    %c0_i32 = arith.constant 0 : i32
    return %arg0, %arg1 : i32, i32
  }
}

</mosaic_0001>

<llo_original>
// kernel: tpu_custom_call.1
$region0: #{tpu_custom_call.1}
  #allocation0 [shape = 'u32[]', space=smem, size = 0x4, offset = 0x4, fixed_abs, tag = 'smem constant byte address 0x4 - core index']
  #allocation1 [shape = 'u32[144,128]{1,0:T(1,128)}', space=vmem, size = 0x12000, scoped, tag = 'internal scratch']
  #allocation2 [shape = 'f32[256,200]{1,0:T(8,128)}', space=vmem, size = 0x40000, scoped, tag = 'scratch operand']
  %s0 = inlined_call_operand.vmem [shape: f32[300,1536], index: 0, kind: input, shape index: {}]
  %s1 = inlined_call_operand.vmem [shape: f32[1536,200], index: 1, kind: input, shape index: {}]
  %s2 = inlined_call_operand.vmem [shape: f32[300,200], index: 2, kind: output, shape index: {}]
  %s3 = sld [smem:[#allocation0]]
  $region105: #{tpu_custom_call.1} parent=0
    _
  %s5 = ssub.s32 1, %s3
  %s6 = scalar_select 0, %s5, %s3
  $region1: #{tpu_custom_call.1} parent=0
    #allocation3 [shape = 'u8[1048576]{0}', space=vmem, size = 0x100000, scoped, tag = 'input window, operand 0']
    #allocation4 [shape = 'u8[524288]{0}', space=vmem, size = 0x80000, scoped, tag = 'output window, operand 0']
    loop: start=0, step=1, limit=8
    $region2: #{tpu_custom_call.1} parent=1 // loop_pre_header
      _
    $region3: #{tpu_custom_call.1} parent=1 // loop_header
      %s8 = sphi 0, %s12
      %p9 = scmp.ge.s32.totalorder %s8, 8
      %s15 = sphi 0, %s34
      %s16 = sphi 0, %s30
      %s17 = sphi 0, %s26
      %s18 = sphi 0, %s15
      %s19 = sphi 0, %s16
      %s20 = sphi 0, %s17
      %s21 = sphi 0, %s18
      %s22 = sphi 0, %s19
      %s23 = sphi 0, %s20
      %s39 = sphi 0, %s41
      %s42 = sphi 0, %s39
      %s43 = sphi 0, %s42
      %s59 = sphi 0, %s43
      %s67 = sphi 0, %s69
      %s70 = sphi 0, %s67
      %s71 = sphi 0, %s70
      %s87 = sphi 0, %s71
      %s95 = sphi 0, %s97
      %s98 = sphi 0, %s95
      %s99 = sphi 0, %s98
      %s115 = sphi 0, %s99
    $region4: #{tpu_custom_call.1} parent=1 // loop_header_branch
      %11 = sbr.rel (%p9) target = $region8
    $region5: #{tpu_custom_call.1} parent=1 // loop_body
      %s13 = ssub.s32 %s8, 1
      %s14 = ssub.s32 %s8, 2
      %s24 = sadd.s32 1, %s17
      %p25 = scmp.ge.s32.totalorder %s24, 3
      %s26 = scalar_select %p25, 0, %s24
      %s27 = sadd.s32 1, %s16
      %s28 = scalar_select %p25, %s27, %s16
      %p29 = scmp.ge.s32.totalorder %s28, 1
      %s30 = scalar_select %p29, 0, %s28
      %s31 = sadd.s32 1, %s15
      %s32 = scalar_select %p29, %s31, %s15
      %p33 = scmp.ge.s32.totalorder %s32, 2
      %s34 = scalar_select %p33, 0, %s32
      %s35 = ssub.s32 %s15, %s34
      %s36 = ssub.s32 %s17, %s26
      %s37 = sor.u32 %s35, %s36
      %p38 = scmp.eq.s32.totalorder %s37, 0
      %s40 = sadd.s32 %s39, 1
      %s41 = scalar_select %p38, %s39, %s40
      %p44 = pneg %p38
      %p45 = scmp.eq.s32.totalorder %s8, 5
      %p46 = por %p44, %p45
      %p47 = scmp.ne.s32.totalorder %s39, %s42
      %p48 = scmp.eq.s32.totalorder %s8, 0
      %p49 = por %p47, %p48
      %p50 = scmp.ne.s32.totalorder %s39, %s42
      %p51 = scmp.eq.s32.totalorder %s13, 5
      %p52 = por %p50, %p51
      %p53 = scmp.ne.s32.totalorder %s42, %s43
      %p54 = scmp.eq.s32.totalorder %s13, 0
      %p55 = por %p53, %p54
      %p56 = scmp.ne.s32.totalorder %s42, %s43
      %p57 = scmp.eq.s32.totalorder %s14, 5
      %p58 = por %p56, %p57
      %p60 = scmp.ne.s32.totalorder %s43, %s59
      %p61 = scmp.eq.s32.totalorder %s14, 0
      %p62 = por %p60, %p61
      %s63 = ssub.s32 %s17, %s26
      %s64 = ssub.s32 %s16, %s30
      %s65 = sor.u32 %s63, %s64
      %p66 = scmp.eq.s32.totalorder %s65, 0
      %s68 = sadd.s32 %s67, 1
      %s69 = scalar_select %p66, %s67, %s68
      %p72 = pneg %p66
      %p73 = scmp.eq.s32.totalorder %s8, 5
      %p74 = por %p72, %p73
      %p75 = scmp.ne.s32.totalorder %s67, %s70
      %p76 = scmp.eq.s32.totalorder %s8, 0
      %p77 = por %p75, %p76
      %p78 = scmp.ne.s32.totalorder %s67, %s70
      %p79 = scmp.eq.s32.totalorder %s13, 5
      %p80 = por %p78, %p79
      %p81 = scmp.ne.s32.totalorder %s70, %s71
      %p82 = scmp.eq.s32.totalorder %s13, 0
      %p83 = por %p81, %p82
      %p84 = scmp.ne.s32.totalorder %s70, %s71
      %p85 = scmp.eq.s32.totalorder %s14, 5
      %p86 = por %p84, %p85
      %p88 = scmp.ne.s32.totalorder %s71, %s87
      %p89 = scmp.eq.s32.totalorder %s14, 0
      %p90 = por %p88, %p89
      %s91 = ssub.s32 %s15, %s34
      %s92 = ssub.s32 %s16, %s30
      %s93 = sor.u32 %s91, %s92
      %p94 = scmp.eq.s32.totalorder %s93, 0
      %s96 = sadd.s32 %s95, 1
      %s97 = scalar_select %p94, %s95, %s96
      %p100 = pneg %p94
      %p101 = scmp.eq.s32.totalorder %s8, 5
      %p102 = por %p100, %p101
      %p103 = scmp.ne.s32.totalorder %s95, %s98
      %p104 = scmp.eq.s32.totalorder %s8, 0
      %p105 = por %p103, %p104
      %p106 = scmp.ne.s32.totalorder %s95, %s98
      %p107 = scmp.eq.s32.totalorder %s13, 5
      %p108 = por %p106, %p107
      %p109 = scmp.ne.s32.totalorder %s98, %s99
      %p110 = scmp.eq.s32.totalorder %s13, 0
      %p111 = por %p109, %p110
      %p112 = scmp.ne.s32.totalorder %s98, %s99
      %p113 = scmp.eq.s32.totalorder %s14, 5
      %p114 = por %p112, %p113
      %p116 = scmp.ne.s32.totalorder %s99, %s115
      %p117 = scmp.eq.s32.totalorder %s14, 0
      %p118 = por %p116, %p117
      %p119 = scmp.le.s32.totalorder 1, %s8
      %p120 = scmp.lt.s32.totalorder %s8, 7
      %p121 = pnand %p119, %p120
      %p122 = pneg %p121
      // Predicated region
      $region9: #{tpu_custom_call.1} parent=5 // pred_check
        _
      $region10: #{tpu_custom_call.1} parent=5 // pred_check_branch
        %124 = sbr.rel (%p121) target = $region12
      $region11: #{tpu_custom_call.1} parent=5 // pred_region
        %s125 = ssub.s32 %s8, 1
      $region12: #{tpu_custom_call.1} parent=5 // pred_fallthru
        _
      %p126 = scmp.lt.s32.totalorder %s8, 6
      // Predicated region
      $region13: #{tpu_custom_call.1} parent=5 // pred_check
        %p127 = pneg %p126
      $region14: #{tpu_custom_call.1} parent=5 // pred_check_branch
        %129 = sbr.rel (%p127) target = $region16
      $region15: #{tpu_custom_call.1} parent=5 // pred_region
        // Predicated region
        $region17: #{tpu_custom_call.1} parent=15 // pred_check
          %p130 = pneg %p49
        $region18: #{tpu_custom_call.1} parent=15 // pred_check_branch
          %132 = sbr.rel (%p130) target = $region20
        $region19: #{tpu_custom_call.1} parent=15 // pred_region
          %s133 = sand.u32 %s39, 1
          %s134 = sand.u32 %s39, 1
          %s135 = smul.addr %s134, 1024
          %s136 = scalar_lea.vmem [#allocation3], %s135
          %s137 = smul.u32 32, %s15
          %s138 = smul.u32 4, %s17
          %s139 = ssub.s32 38, %s137
          %p140 = scmp.lt.s32.totalorder %s139, 32
          %s141 = scalar_select %p140, %s139, 32
          %s142 = smul.u32 128, %s141
          %s143 = smul.u32 %s142, 4
          %p144 = scmp.ne.s32.totalorder 0, %s143
          %s145 = smul.addr %s137, 12
          %s146 = sadd.s32 %s138, %s145
          %s147 = smul.addr %s146, 8
          %s148 = scalar_lea.vmem %s0, %s147
          // Predicated region
          $region21: #{tpu_custom_call.1} parent=19 // pred_check
            %p149 = pneg %p144
          $region22: #{tpu_custom_call.1} parent=19 // pred_check_branch
            %151 = sbr.rel (%p149) target = $region24
          $region23: #{tpu_custom_call.1} parent=19 // pred_region
            // Predicated region
            $region25: #{tpu_custom_call.1} parent=23 // pred_check
              _
            $region26: #{tpu_custom_call.1} parent=23 // pred_check_branch
              %153 = sbr.rel (0) target = $region28
            $region27: #{tpu_custom_call.1} parent=23 // pred_region
              %s154 = sshrl.u32 %s141, 4
              // While loop
              $region29: #{tpu_custom_call.1} parent=27 // loop_pre_header
                _
              $region30: #{tpu_custom_call.1} parent=27 // loop_header
                %s156 = sphi 0, %s158
                %p157 = scmp.ge.s32.totalorder %s156, %s154
                %s161 = sphi 0, %s294
                %s162 = sphi %s148, %s297
                %s163 = sphi %s136, %s298
              $region31: #{tpu_custom_call.1} parent=27 // loop_header_branch
                %160 = sbr.rel (%p157) target = $region35
              $region32: #{tpu_custom_call.1} parent=27 // loop_body
                %v164 = vld [vmem:[%s162] sm:$0xff]
                %165 = vst [vmem:[%s163] sm:$0xff] %v164
                %v166 = vld [vmem:[%s162 + $0x60] sm:$0xff]
                %167 = vst [vmem:[%s163 + $0x20] sm:$0xff] %v166
                %v168 = vld [vmem:[%s162 + $0xc0] sm:$0xff]
                %169 = vst [vmem:[%s163 + $0x40] sm:$0xff] %v168
                %v170 = vld [vmem:[%s162 + $0x120] sm:$0xff]
                %171 = vst [vmem:[%s163 + $0x60] sm:$0xff] %v170
                %v172 = vld [vmem:[%s162 + $0x180] sm:$0xff]
                %173 = vst [vmem:[%s163 + $0x80] sm:$0xff] %v172
                %v174 = vld [vmem:[%s162 + $0x1e0] sm:$0xff]
                %175 = vst [vmem:[%s163 + $0xa0] sm:$0xff] %v174
                %v176 = vld [vmem:[%s162 + $0x240] sm:$0xff]
                %177 = vst [vmem:[%s163 + $0xc0] sm:$0xff] %v176
                %v178 = vld [vmem:[%s162 + $0x2a0] sm:$0xff]
                %179 = vst [vmem:[%s163 + $0xe0] sm:$0xff] %v178
                %v180 = vld [vmem:[%s162 + $0x300] sm:$0xff]
                %181 = vst [vmem:[%s163 + $0x100] sm:$0xff] %v180
                %v182 = vld [vmem:[%s162 + $0x360] sm:$0xff]
                %183 = vst [vmem:[%s163 + $0x120] sm:$0xff] %v182
                %v184 = vld [vmem:[%s162 + $0x3c0] sm:$0xff]
                %185 = vst [vmem:[%s163 + $0x140] sm:$0xff] %v184
                %v186 = vld [vmem:[%s162 + $0x420] sm:$0xff]
                %187 = vst [vmem:[%s163 + $0x160] sm:$0xff] %v186
                %v188 = vld [vmem:[%s162 + $0x480] sm:$0xff]
                %189 = vst [vmem:[%s163 + $0x180] sm:$0xff] %v188
                %v190 = vld [vmem:[%s162 + $0x4e0] sm:$0xff]
                %191 = vst [vmem:[%s163 + $0x1a0] sm:$0xff] %v190
                %v192 = vld [vmem:[%s162 + $0x540] sm:$0xff]
                %193 = vst [vmem:[%s163 + $0x1c0] sm:$0xff] %v192
                %v194 = vld [vmem:[%s162 + $0x5a0] sm:$0xff]
                %195 = vst [vmem:[%s163 + $0x1e0] sm:$0xff] %v194
                %v196 = vld [vmem:[%s162 + $0x8] sm:$0xff]
                %197 = vst [vmem:[%s163 + $0x8] sm:$0xff] %v196
                %v198 = vld [vmem:[%s162 + $0x68] sm:$0xff]
                %199 = vst [vmem:[%s163 + $0x28] sm:$0xff] %v198
                %v200 = vld [vmem:[%s162 + $0xc8] sm:$0xff]
                %201 = vst [vmem:[%s163 + $0x48] sm:$0xff] %v200
                %v202 = vld [vmem:[%s162 + $0x128] sm:$0xff]
                %203 = vst [vmem:[%s163 + $0x68] sm:$0xff] %v202
                %v204 = vld [vmem:[%s162 + $0x188] sm:$0xff]
                %205 = vst [vmem:[%s163 + $0x88] sm:$0xff] %v204
                %v206 = vld [vmem:[%s162 + $0x1e8] sm:$0xff]
                %207 = vst [vmem:[%s163 + $0xa8] sm:$0xff] %v206
                %v208 = vld [vmem:[%s162 + $0x248] sm:$0xff]
                %209 = vst [vmem:[%s163 + $0xc8] sm:$0xff] %v208
                %v210 = vld [vmem:[%s162 + $0x2a8] sm:$0xff]
                %211 = vst [vmem:[%s163 + $0xe8] sm:$0xff] %v210
                %v212 = vld [vmem:[%s162 + $0x308] sm:$0xff]
                %213 = vst [vmem:[%s163 + $0x108] sm:$0xff] %v212
                %v214 = vld [vmem:[%s162 + $0x368] sm:$0xff]
                %215 = vst [vmem:[%s163 + $0x128] sm:$0xff] %v214
                %v216 = vld [vmem:[%s162 + $0x3c8] sm:$0xff]
                %217 = vst [vmem:[%s163 + $0x148] sm:$0xff] %v216
                %v218 = vld [vmem:[%s162 + $0x428] sm:$0xff]
                %219 = vst [vmem:[%s163 + $0x168] sm:$0xff] %v218
                %v220 = vld [vmem:[%s162 + $0x488] sm:$0xff]
                %221 = vst [vmem:[%s163 + $0x188] sm:$0xff] %v220
                %v222 = vld [vmem:[%s162 + $0x4e8] sm:$0xff]
                %223 = vst [vmem:[%s163 + $0x1a8] sm:$0xff] %v222
                %v224 = vld [vmem:[%s162 + $0x548] sm:$0xff]
                %225 = vst [vmem:[%s163 + $0x1c8] sm:$0xff] %v224
                %v226 = vld [vmem:[%s162 + $0x5a8] sm:$0xff]
                %227 = vst [vmem:[%s163 + $0x1e8] sm:$0xff] %v226
                %v228 = vld [vmem:[%s162 + $0x10] sm:$0xff]
                %229 = vst [vmem:[%s163 + $0x10] sm:$0xff] %v228
                %v230 = vld [vmem:[%s162 + $0x70] sm:$0xff]
                %231 = vst [vmem:[%s163 + $0x30] sm:$0xff] %v230
                %v232 = vld [vmem:[%s162 + $0xd0] sm:$0xff]
                %233 = vst [vmem:[%s163 + $0x50] sm:$0xff] %v232
                %v234 = vld [vmem:[%s162 + $0x130] sm:$0xff]
                %235 = vst [vmem:[%s163 + $0x70] sm:$0xff] %v234
                %v236 = vld [vmem:[%s162 + $0x190] sm:$0xff]
                %237 = vst [vmem:[%s163 + $0x90] sm:$0xff] %v236
                %v238 = vld [vmem:[%s162 + $0x1f0] sm:$0xff]
                %239 = vst [vmem:[%s163 + $0xb0] sm:$0xff] %v238
                %v240 = vld [vmem:[%s162 + $0x250] sm:$0xff]
                %241 = vst [vmem:[%s163 + $0xd0] sm:$0xff] %v240
                %v242 = vld [vmem:[%s162 + $0x2b0] sm:$0xff]
                %243 = vst [vmem:[%s163 + $0xf0] sm:$0xff] %v242
                %v244 = vld [vmem:[%s162 + $0x310] sm:$0xff]
                %245 = vst [vmem:[%s163 + $0x110] sm:$0xff] %v244
                %v246 = vld [vmem:[%s162 + $0x370] sm:$0xff]
                %247 = vst [vmem:[%s163 + $0x130] sm:$0xff] %v246
                %v248 = vld [vmem:[%s162 + $0x3d0] sm:$0xff]
                %249 = vst [vmem:[%s163 + $0x150] sm:$0xff] %v248
                %v250 = vld [vmem:[%s162 + $0x430] sm:$0xff]
                %251 = vst [vmem:[%s163 + $0x170] sm:$0xff] %v250
                %v252 = vld [vmem:[%s162 + $0x490] sm:$0xff]
                %253 = vst [vmem:[%s163 + $0x190] sm:$0xff] %v252
                %v254 = vld [vmem:[%s162 + $0x4f0] sm:$0xff]
                %255 = vst [vmem:[%s163 + $0x1b0] sm:$0xff] %v254
                %v256 = vld [vmem:[%s162 + $0x550] sm:$0xff]
                %257 = vst [vmem:[%s163 + $0x1d0] sm:$0xff] %v256
                %v258 = vld [vmem:[%s162 + $0x5b0] sm:$0xff]
                %259 = vst [vmem:[%s163 + $0x1f0] sm:$0xff] %v258
                %v260 = vld [vmem:[%s162 + $0x18] sm:$0xff]
                %261 = vst [vmem:[%s163 + $0x18] sm:$0xff] %v260
                %v262 = vld [vmem:[%s162 + $0x78] sm:$0xff]
                %263 = vst [vmem:[%s163 + $0x38] sm:$0xff] %v262
                %v264 = vld [vmem:[%s162 + $0xd8] sm:$0xff]
                %265 = vst [vmem:[%s163 + $0x58] sm:$0xff] %v264
                %v266 = vld [vmem:[%s162 + $0x138] sm:$0xff]
                %267 = vst [vmem:[%s163 + $0x78] sm:$0xff] %v266
                %v268 = vld [vmem:[%s162 + $0x198] sm:$0xff]
                %269 = vst [vmem:[%s163 + $0x98] sm:$0xff] %v268
                %v270 = vld [vmem:[%s162 + $0x1f8] sm:$0xff]
                %271 = vst [vmem:[%s163 + $0xb8] sm:$0xff] %v270
                %v272 = vld [vmem:[%s162 + $0x258] sm:$0xff]
                %273 = vst [vmem:[%s163 + $0xd8] sm:$0xff] %v272
                %v274 = vld [vmem:[%s162 + $0x2b8] sm:$0xff]
                %275 = vst [vmem:[%s163 + $0xf8] sm:$0xff] %v274
                %v276 = vld [vmem:[%s162 + $0x318] sm:$0xff]
                %277 = vst [vmem:[%s163 + $0x118] sm:$0xff] %v276
                %v278 = vld [vmem:[%s162 + $0x378] sm:$0xff]
                %279 = vst [vmem:[%s163 + $0x138] sm:$0xff] %v278
                %v280 = vld [vmem:[%s162 + $0x3d8] sm:$0xff]
                %281 = vst [vmem:[%s163 + $0x158] sm:$0xff] %v280
                %v282 = vld [vmem:[%s162 + $0x438] sm:$0xff]
                %283 = vst [vmem:[%s163 + $0x178] sm:$0xff] %v282
                %v284 = vld [vmem:[%s162 + $0x498] sm:$0xff]
                %285 = vst [vmem:[%s163 + $0x198] sm:$0xff] %v284
                %v286 = vld [vmem:[%s162 + $0x4f8] sm:$0xff]
                %287 = vst [vmem:[%s163 + $0x1b8] sm:$0xff] %v286
                %v288 = vld [vmem:[%s162 + $0x558] sm:$0xff]
                %289 = vst [vmem:[%s163 + $0x1d8] sm:$0xff] %v288
                %v290 = vld [vmem:[%s162 + $0x5b8] sm:$0xff]
                %291 = vst [vmem:[%s163 + $0x1f8] sm:$0xff] %v290
                %s292 = sadd.s32 1, %s161
                %p293 = scmp.ge.s32.totalorder %s292, %s154
                %s294 = scalar_select %p293, 0, %s292
                %s295 = smul.u32 %s294, 1536
                %s296 = smul.u32 %s294, 512
                %s297 = scalar_lea.vmem %s148, %s295
                %s298 = scalar_lea.vmem %s136, %s296 [#allocation3]
              $region33: #{tpu_custom_call.1} parent=27 // loop_footer
                %s158 = sadd.s32 %s156, 1
              $region34: #{tpu_custom_call.1} parent=27 // loop_footer_branch
                %155 = sbr.rel target = $region30
              $region35: #{tpu_custom_call.1} parent=27 // loop_exit
                _
              %s299 = sshrl.u32 %s141, 4
              %s300 = sand.u32 %s141, 15
              %s301 = smul.u32 %s299, 16
              %s302 = smul.u32 96, %s301
              %s303 = scalar_lea.vmem %s148, %s302
              %s304 = smul.u32 32, %s301
              %s305 = scalar_lea.vmem %s136, %s304 [#allocation3]
              // While loop
              $region36: #{tpu_custom_call.1} parent=27 // loop_pre_header
                _
              $region37: #{tpu_custom_call.1} parent=27 // loop_header
                %s307 = sphi 0, %s309
                %p308 = scmp.ge.s32.totalorder %s307, %s300
                %s312 = sphi 0, %s325
                %s313 = sphi %s303, %s328
                %s314 = sphi %s305, %s329
              $region38: #{tpu_custom_call.1} parent=27 // loop_header_branch
                %311 = sbr.rel (%p308) target = $region42
              $region39: #{tpu_custom_call.1} parent=27 // loop_body
                %v315 = vld [vmem:[%s313] sm:$0xff]
                %316 = vst [vmem:[%s314] sm:$0xff] %v315
                %v317 = vld [vmem:[%s313 + $0x8] sm:$0xff]
                %318 = vst [vmem:[%s314 + $0x8] sm:$0xff] %v317
                %v319 = vld [vmem:[%s313 + $0x10] sm:$0xff]
                %320 = vst [vmem:[%s314 + $0x10] sm:$0xff] %v319
                %v321 = vld [vmem:[%s313 + $0x18] sm:$0xff]
                %322 = vst [vmem:[%s314 + $0x18] sm:$0xff] %v321
                %s323 = sadd.s32 1, %s312
                %p324 = scmp.ge.s32.totalorder %s323, %s300
                %s325 = scalar_select %p324, 0, %s323
                %s326 = smul.u32 %s325, 96
                %s327 = smul.u32 %s325, 32
                %s328 = scalar_lea.vmem %s303, %s326
                %s329 = scalar_lea.vmem %s305, %s327 [#allocation3]
              $region40: #{tpu_custom_call.1} parent=27 // loop_footer
                %s309 = sadd.s32 %s307, 1
              $region41: #{tpu_custom_call.1} parent=27 // loop_footer_branch
                %306 = sbr.rel target = $region37
              $region42: #{tpu_custom_call.1} parent=27 // loop_exit
                _
            $region28: #{tpu_custom_call.1} parent=23 // pred_fallthru
              _
            // Predicated region
            $region43: #{tpu_custom_call.1} parent=23 // pred_check
              _
            $region44: #{tpu_custom_call.1} parent=23 // pred_check_branch
              %331 = sbr.rel target = $region46
            $region45: #{tpu_custom_call.1} parent=23 // pred_region
              _
            $region46: #{tpu_custom_call.1} parent=23 // pred_fallthru
              _
          $region24: #{tpu_custom_call.1} parent=19 // pred_fallthru
            _
          %332 = vnop
        $region20: #{tpu_custom_call.1} parent=15 // pred_fallthru
          _
        // Predicated region
        $region47: #{tpu_custom_call.1} parent=15 // pred_check
          %p333 = pneg %p77
        $region48: #{tpu_custom_call.1} parent=15 // pred_check_branch
          %335 = sbr.rel (%p333) target = $region50
        $region49: #{tpu_custom_call.1} parent=15 // pred_region
          %s336 = smul.u32 64, %s17
          %s337 = smul.u32 2, %s16
          %p338 = scmp.lt.s32.totalorder %s336, 191
          %s339 = scalar_select %p338, %s336, 191
          %p340 = scmp.lt.s32.totalorder %s337, 1
          %s341 = scalar_select %p340, %s337, 1
          %s342 = smul.addr %s339, 2
          %s343 = sadd.s32 %s341, %s342
          %s344 = smul.addr %s343, 8
          %s345 = scalar_lea.vmem %s1, %s344
          %s346 = smul.u32 64, %s17
          %s347 = smul.u32 2, %s16
        $region50: #{tpu_custom_call.1} parent=15 // pred_fallthru
          _
      $region16: #{tpu_custom_call.1} parent=5 // pred_fallthru
        _
      %p348 = scmp.le.s32.totalorder 1, %s8
      %p349 = scmp.lt.s32.totalorder %s8, 7
      %p350 = pnand %p348, %p349
      %p351 = pneg %p350
      // Predicated region
      $region51: #{tpu_custom_call.1} parent=5 // pred_check
        _
      $region52: #{tpu_custom_call.1} parent=5 // pred_check_branch
        %353 = sbr.rel (%p350) target = $region54
      $region53: #{tpu_custom_call.1} parent=5 // pred_region
        %s354 = ssub.s32 %s8, 1
        %s355 = sand.u32 %s42, 1
        %s356 = sand.u32 %s42, 1
        %s357 = smul.addr %s356, 1024
        %s358 = scalar_lea.vmem [#allocation3], %s357
        // Predicated region
        $region55: #{tpu_custom_call.1} parent=53 // pred_check
          %p359 = pneg %p55
        $region56: #{tpu_custom_call.1} parent=53 // pred_check_branch
          %361 = sbr.rel (%p359) target = $region58
        $region57: #{tpu_custom_call.1} parent=53 // pred_region
          _
        $region58: #{tpu_custom_call.1} parent=53 // pred_fallthru
          _
        %s362 = sand.u32 %s42, 1
        %s363 = sand.u32 %s42, 1
        %s364 = smul.addr %s363, 1024
        %s365 = scalar_lea.vmem [#allocation3], %s364
        %p366 = pneg %p55
        %p367 = pneg %p52
        %s368 = smul.u32 64, %s20
        %s369 = smul.u32 2, %s19
        %p370 = scmp.lt.s32.totalorder %s368, 191
        %s371 = scalar_select %p370, %s368, 191
        %p372 = scmp.lt.s32.totalorder %s369, 1
        %s373 = scalar_select %p372, %s369, 1
        %s374 = smul.addr %s371, 2
        %s375 = sadd.s32 %s373, %s374
        %s376 = smul.addr %s375, 8
        %s377 = scalar_lea.vmem %s1, %s376
        %p378 = pneg %p83
        %p379 = pneg %p80
        %p380 = pneg %p111
        %p381 = pneg %p108
        %s382 = sand.u32 %s98, 1
        %s383 = sand.u32 %s98, 1
        %s384 = smul.addr %s383, 512
        %s385 = scalar_lea.vmem [#allocation4], %s384
        %s386 = smul.u32 32, %s18
        %s387 = smul.u32 4, %s20
        %s388 = ssub.s32 38, %s386
        %p389 = scmp.lt.s32.totalorder %s388, 32
        %s390 = scalar_select %p389, %s388, 32
        %s391 = smul.u32 128, %s390
        %s392 = smul.u32 %s391, 4
        %s393 = smul.u32 64, %s20
        %s394 = smul.u32 2, %s19
        %p395 = scmp.lt.s32.totalorder %s393, 191
        %s396 = scalar_select %p395, %s393, 191
        %p397 = scmp.lt.s32.totalorder %s394, 1
        %s398 = scalar_select %p397, %s394, 1
        %s399 = smul.addr %s396, 2
        %s400 = sadd.s32 %s398, %s399
        %s401 = smul.addr %s400, 8
        %s402 = scalar_lea.vmem %s1, %s401
        %s403 = smul.u32 64, %s20
        %s404 = smul.u32 2, %s19
        %s405 = smul.u32 32, %s18
        %s406 = smul.u32 2, %s19
        %s407 = ssub.s32 38, %s405
        %p408 = scmp.lt.s32.totalorder %s407, 32
        %s409 = scalar_select %p408, %s407, 32
        %s410 = smul.u32 128, %s409
        %s411 = smul.u32 %s410, 2
        %v412 = vld [vmem:[%s358] sm:$0xff]
        %v413 = vld [vmem:[%s358 + $0x8] sm:$0xff]
        %v414 = vld [vmem:[%s358 + $0x10] sm:$0xff]
        %v415 = vld [vmem:[%s358 + $0x18] sm:$0xff]
        %v416 = vld [vmem:[%s358 + $0x20] sm:$0xff]
        %v417 = vld [vmem:[%s358 + $0x28] sm:$0xff]
        %v418 = vld [vmem:[%s358 + $0x30] sm:$0xff]
        %v419 = vld [vmem:[%s358 + $0x38] sm:$0xff]
        %v420 = vld [vmem:[%s358 + $0x40] sm:$0xff]
        %v421 = vld [vmem:[%s358 + $0x48] sm:$0xff]
        %v422 = vld [vmem:[%s358 + $0x50] sm:$0xff]
        %v423 = vld [vmem:[%s358 + $0x58] sm:$0xff]
        %v424 = vld [vmem:[%s358 + $0x60] sm:$0xff]
        %v425 = vld [vmem:[%s358 + $0x68] sm:$0xff]
        %v426 = vld [vmem:[%s358 + $0x70] sm:$0xff]
        %v427 = vld [vmem:[%s358 + $0x78] sm:$0xff]
        %v428 = vld [vmem:[%s358 + $0x80] sm:$0xff]
        %v429 = vld [vmem:[%s358 + $0x88] sm:$0xff]
        %v430 = vld [vmem:[%s358 + $0x90] sm:$0xff]
        %v431 = vld [vmem:[%s358 + $0x98] sm:$0xff]
        %v432 = vld [vmem:[%s358 + $0xa0] sm:$0xff]
        %v433 = vld [vmem:[%s358 + $0xa8] sm:$0xff]
        %v434 = vld [vmem:[%s358 + $0xb0] sm:$0xff]
        %v435 = vld [vmem:[%s358 + $0xb8] sm:$0xff]
        %v436 = vld [vmem:[%s358 + $0xc0] sm:$0xff]
        %v437 = vld [vmem:[%s358 + $0xc8] sm:$0xff]
        %v438 = vld [vmem:[%s358 + $0xd0] sm:$0xff]
        %v439 = vld [vmem:[%s358 + $0xd8] sm:$0xff]
        %v440 = vld [vmem:[%s358 + $0xe0] sm:$0xff]
        %v441 = vld [vmem:[%s358 + $0xe8] sm:$0xff]
        %v442 = vld [vmem:[%s358 + $0xf0] sm:$0xff]
        %v443 = vld [vmem:[%s358 + $0xf8] sm:$0xff]
        %v444 = vld [vmem:[%s358 + $0x100] sm:$0xff]
        %v445 = vld [vmem:[%s358 + $0x108] sm:$0xff]
        %v446 = vld [vmem:[%s358 + $0x110] sm:$0xff]
        %v447 = vld [vmem:[%s358 + $0x118] sm:$0xff]
        %v448 = vld [vmem:[%s358 + $0x120] sm:$0xff]
        %v449 = vld [vmem:[%s358 + $0x128] sm:$0xff]
        %v450 = vld [vmem:[%s358 + $0x130] sm:$0xff]
        %v451 = vld [vmem:[%s358 + $0x138] sm:$0xff]
        %v452 = vld [vmem:[%s358 + $0x140] sm:$0xff]
        %v453 = vld [vmem:[%s358 + $0x148] sm:$0xff]
        %v454 = vld [vmem:[%s358 + $0x150] sm:$0xff]
        %v455 = vld [vmem:[%s358 + $0x158] sm:$0xff]
        %v456 = vld [vmem:[%s358 + $0x160] sm:$0xff]
        %v457 = vld [vmem:[%s358 + $0x168] sm:$0xff]
        %v458 = vld [vmem:[%s358 + $0x170] sm:$0xff]
        %v459 = vld [vmem:[%s358 + $0x178] sm:$0xff]
        %v460 = vld [vmem:[%s358 + $0x180] sm:$0xff]
        %v461 = vld [vmem:[%s358 + $0x188] sm:$0xff]
        %v462 = vld [vmem:[%s358 + $0x190] sm:$0xff]
        %v463 = vld [vmem:[%s358 + $0x198] sm:$0xff]
        %v464 = vld [vmem:[%s358 + $0x1a0] sm:$0xff]
        %v465 = vld [vmem:[%s358 + $0x1a8] sm:$0xff]
        %v466 = vld [vmem:[%s358 + $0x1b0] sm:$0xff]
        %v467 = vld [vmem:[%s358 + $0x1b8] sm:$0xff]
        %v468 = vld [vmem:[%s358 + $0x1c0] sm:$0xff]
        %v469 = vld [vmem:[%s358 + $0x1c8] sm:$0xff]
        %v470 = vld [vmem:[%s358 + $0x1d0] sm:$0xff]
        %v471 = vld [vmem:[%s358 + $0x1d8] sm:$0xff]
        %v472 = vld [vmem:[%s358 + $0x1e0] sm:$0xff]
        %v473 = vld [vmem:[%s358 + $0x1e8] sm:$0xff]
        %v474 = vld [vmem:[%s358 + $0x1f0] sm:$0xff]
        %v475 = vld [vmem:[%s358 + $0x1f8] sm:$0xff]
        %v476 = vld [vmem:[%s358 + $0x200] sm:$0xff]
        %v477 = vld [vmem:[%s358 + $0x208] sm:$0xff]
        %v478 = vld [vmem:[%s358 + $0x210] sm:$0xff]
        %v479 = vld [vmem:[%s358 + $0x218] sm:$0xff]
        %v480 = vld [vmem:[%s358 + $0x220] sm:$0xff]
        %v481 = vld [vmem:[%s358 + $0x228] sm:$0xff]
        %v482 = vld [vmem:[%s358 + $0x230] sm:$0xff]
        %v483 = vld [vmem:[%s358 + $0x238] sm:$0xff]
        %v484 = vld [vmem:[%s358 + $0x240] sm:$0xff]
        %v485 = vld [vmem:[%s358 + $0x248] sm:$0xff]
        %v486 = vld [vmem:[%s358 + $0x250] sm:$0xff]
        %v487 = vld [vmem:[%s358 + $0x258] sm:$0xff]
        %v488 = vld [vmem:[%s358 + $0x260] sm:$0xff]
        %v489 = vld [vmem:[%s358 + $0x268] sm:$0xff]
        %v490 = vld [vmem:[%s358 + $0x270] sm:$0xff]
        %v491 = vld [vmem:[%s358 + $0x278] sm:$0xff]
        %v492 = vld [vmem:[%s358 + $0x280] sm:$0xff]
        %v493 = vld [vmem:[%s358 + $0x288] sm:$0xff]
        %v494 = vld [vmem:[%s358 + $0x290] sm:$0xff]
        %v495 = vld [vmem:[%s358 + $0x298] sm:$0xff]
        %v496 = vld [vmem:[%s358 + $0x2a0] sm:$0xff]
        %v497 = vld [vmem:[%s358 + $0x2a8] sm:$0xff]
        %v498 = vld [vmem:[%s358 + $0x2b0] sm:$0xff]
        %v499 = vld [vmem:[%s358 + $0x2b8] sm:$0xff]
        %v500 = vld [vmem:[%s358 + $0x2c0] sm:$0xff]
        %v501 = vld [vmem:[%s358 + $0x2c8] sm:$0xff]
        %v502 = vld [vmem:[%s358 + $0x2d0] sm:$0xff]
        %v503 = vld [vmem:[%s358 + $0x2d8] sm:$0xff]
        %v504 = vld [vmem:[%s358 + $0x2e0] sm:$0xff]
        %v505 = vld [vmem:[%s358 + $0x2e8] sm:$0xff]
        %v506 = vld [vmem:[%s358 + $0x2f0] sm:$0xff]
        %v507 = vld [vmem:[%s358 + $0x2f8] sm:$0xff]
        %v508 = vld [vmem:[%s358 + $0x300] sm:$0xff]
        %v509 = vld [vmem:[%s358 + $0x308] sm:$0xff]
        %v510 = vld [vmem:[%s358 + $0x310] sm:$0xff]
        %v511 = vld [vmem:[%s358 + $0x318] sm:$0xff]
        %v512 = vld [vmem:[%s358 + $0x320] sm:$0xff]
        %v513 = vld [vmem:[%s358 + $0x328] sm:$0xff]
        %v514 = vld [vmem:[%s358 + $0x330] sm:$0xff]
        %v515 = vld [vmem:[%s358 + $0x338] sm:$0xff]
        %v516 = vld [vmem:[%s358 + $0x340] sm:$0xff]
        %v517 = vld [vmem:[%s358 + $0x348] sm:$0xff]
        %v518 = vld [vmem:[%s358 + $0x350] sm:$0xff]
        %v519 = vld [vmem:[%s358 + $0x358] sm:$0xff]
        %v520 = vld [vmem:[%s358 + $0x360] sm:$0xff]
        %v521 = vld [vmem:[%s358 + $0x368] sm:$0xff]
        %v522 = vld [vmem:[%s358 + $0x370] sm:$0xff]
        %v523 = vld [vmem:[%s358 + $0x378] sm:$0xff]
        %v524 = vld [vmem:[%s358 + $0x380] sm:$0xff]
        %v525 = vld [vmem:[%s358 + $0x388] sm:$0xff]
        %v526 = vld [vmem:[%s358 + $0x390] sm:$0xff]
        %v527 = vld [vmem:[%s358 + $0x398] sm:$0xff]
        %v528 = vld [vmem:[%s358 + $0x3a0] sm:$0xff]
        %v529 = vld [vmem:[%s358 + $0x3a8] sm:$0xff]
        %v530 = vld [vmem:[%s358 + $0x3b0] sm:$0xff]
        %v531 = vld [vmem:[%s358 + $0x3b8] sm:$0xff]
        %v532 = vld [vmem:[%s358 + $0x3c0] sm:$0xff]
        %v533 = vld [vmem:[%s358 + $0x3c8] sm:$0xff]
        %v534 = vld [vmem:[%s358 + $0x3d0] sm:$0xff]
        %v535 = vld [vmem:[%s358 + $0x3d8] sm:$0xff]
        %v536 = vld [vmem:[%s358 + $0x3e0] sm:$0xff]
        %v537 = vld [vmem:[%s358 + $0x3e8] sm:$0xff]
        %v538 = vld [vmem:[%s358 + $0x3f0] sm:$0xff]
        %v539 = vld [vmem:[%s358 + $0x3f8] sm:$0xff]
        %v540 = vpack.c.bf16 %v416, %v412
        %v541 = vpack.c.bf16 %v417, %v413
        %v542 = vpack.c.bf16 %v418, %v414
        %v543 = vpack.c.bf16 %v419, %v415
        %v544 = vpack.c.bf16 %v424, %v420
        %v545 = vpack.c.bf16 %v425, %v421
        %v546 = vpack.c.bf16 %v426, %v422
        %v547 = vpack.c.bf16 %v427, %v423
        %v548 = vpack.c.bf16 %v432, %v428
        %v549 = vpack.c.bf16 %v433, %v429
        %v550 = vpack.c.bf16 %v434, %v430
        %v551 = vpack.c.bf16 %v435, %v431
        %v552 = vpack.c.bf16 %v440, %v436
        %v553 = vpack.c.bf16 %v441, %v437
        %v554 = vpack.c.bf16 %v442, %v438
        %v555 = vpack.c.bf16 %v443, %v439
        %v556 = vpack.c.bf16 %v448, %v444
        %v557 = vpack.c.bf16 %v449, %v445
        %v558 = vpack.c.bf16 %v450, %v446
        %v559 = vpack.c.bf16 %v451, %v447
        %v560 = vpack.c.bf16 %v456, %v452
        %v561 = vpack.c.bf16 %v457, %v453
        %v562 = vpack.c.bf16 %v458, %v454
        %v563 = vpack.c.bf16 %v459, %v455
        %v564 = vpack.c.bf16 %v464, %v460
        %v565 = vpack.c.bf16 %v465, %v461
        %v566 = vpack.c.bf16 %v466, %v462
        %v567 = vpack.c.bf16 %v467, %v463
        %v568 = vpack.c.bf16 %v472, %v468
        %v569 = vpack.c.bf16 %v473, %v469
        %v570 = vpack.c.bf16 %v474, %v470
        %v571 = vpack.c.bf16 %v475, %v471
        %v572 = vpack.c.bf16 %v480, %v476
        %v573 = vpack.c.bf16 %v481, %v477
        %v574 = vpack.c.bf16 %v482, %v478
        %v575 = vpack.c.bf16 %v483, %v479
        %v576 = vpack.c.bf16 %v488, %v484
        %v577 = vpack.c.bf16 %v489, %v485
        %v578 = vpack.c.bf16 %v490, %v486
        %v579 = vpack.c.bf16 %v491, %v487
        %v580 = vpack.c.bf16 %v496, %v492
        %v581 = vpack.c.bf16 %v497, %v493
        %v582 = vpack.c.bf16 %v498, %v494
        %v583 = vpack.c.bf16 %v499, %v495
        %v584 = vpack.c.bf16 %v504, %v500
        %v585 = vpack.c.bf16 %v505, %v501
        %v586 = vpack.c.bf16 %v506, %v502
        %v587 = vpack.c.bf16 %v507, %v503
        %v588 = vpack.c.bf16 %v512, %v508
        %v589 = vpack.c.bf16 %v513, %v509
        %v590 = vpack.c.bf16 %v514, %v510
        %v591 = vpack.c.bf16 %v515, %v511
        %v592 = vpack.c.bf16 %v520, %v516
        %v593 = vpack.c.bf16 %v521, %v517
        %v594 = vpack.c.bf16 %v522, %v518
        %v595 = vpack.c.bf16 %v523, %v519
        %v596 = vpack.c.bf16 %v528, %v524
        %v597 = vpack.c.bf16 %v529, %v525
        %v598 = vpack.c.bf16 %v530, %v526
        %v599 = vpack.c.bf16 %v531, %v527
        %v600 = vpack.c.bf16 %v536, %v532
        %v601 = vpack.c.bf16 %v537, %v533
        %v602 = vpack.c.bf16 %v538, %v534
        %v603 = vpack.c.bf16 %v539, %v535
        %v604 = vld [vmem:[%s402] sm:$0xff]
        %v605 = vld [vmem:[%s402 + $0x8] sm:$0xff]
        %v606 = vld [vmem:[%s402 + $0x10] sm:$0xff]
        %v607 = vld [vmem:[%s402 + $0x18] sm:$0xff]
        %v608 = vld [vmem:[%s402 + $0x20] sm:$0xff]
        %v609 = vld [vmem:[%s402 + $0x28] sm:$0xff]
        %v610 = vld [vmem:[%s402 + $0x30] sm:$0xff]
        %v611 = vld [vmem:[%s402 + $0x38] sm:$0xff]
        %v612 = vld [vmem:[%s402 + $0x40] sm:$0xff]
        %v613 = vld [vmem:[%s402 + $0x48] sm:$0xff]
        %v614 = vld [vmem:[%s402 + $0x50] sm:$0xff]
        %v615 = vld [vmem:[%s402 + $0x58] sm:$0xff]
        %v616 = vld [vmem:[%s402 + $0x60] sm:$0xff]
        %v617 = vld [vmem:[%s402 + $0x68] sm:$0xff]
        %v618 = vld [vmem:[%s402 + $0x70] sm:$0xff]
        %v619 = vld [vmem:[%s402 + $0x78] sm:$0xff]
        %v620 = vld [vmem:[%s402 + $0x80] sm:$0xff]
        %v621 = vld [vmem:[%s402 + $0x88] sm:$0xff]
        %v622 = vld [vmem:[%s402 + $0x90] sm:$0xff]
        %v623 = vld [vmem:[%s402 + $0x98] sm:$0xff]
        %v624 = vld [vmem:[%s402 + $0xa0] sm:$0xff]
        %v625 = vld [vmem:[%s402 + $0xa8] sm:$0xff]
        %v626 = vld [vmem:[%s402 + $0xb0] sm:$0xff]
        %v627 = vld [vmem:[%s402 + $0xb8] sm:$0xff]
        %v628 = vld [vmem:[%s402 + $0xc0] sm:$0xff]
        %v629 = vld [vmem:[%s402 + $0xc8] sm:$0xff]
        %v630 = vld [vmem:[%s402 + $0xd0] sm:$0xff]
        %v631 = vld [vmem:[%s402 + $0xd8] sm:$0xff]
        %v632 = vld [vmem:[%s402 + $0xe0] sm:$0xff]
        %v633 = vld [vmem:[%s402 + $0xe8] sm:$0xff]
        %v634 = vld [vmem:[%s402 + $0xf0] sm:$0xff]
        %v635 = vld [vmem:[%s402 + $0xf8] sm:$0xff]
        %v636 = vld [vmem:[%s402 + $0x100] sm:$0xff]
        %v637 = vld [vmem:[%s402 + $0x108] sm:$0xff]
        %v638 = vld [vmem:[%s402 + $0x110] sm:$0xff]
        %v639 = vld [vmem:[%s402 + $0x118] sm:$0xff]
        %v640 = vld [vmem:[%s402 + $0x120] sm:$0xff]
        %v641 = vld [vmem:[%s402 + $0x128] sm:$0xff]
        %v642 = vld [vmem:[%s402 + $0x130] sm:$0xff]
        %v643 = vld [vmem:[%s402 + $0x138] sm:$0xff]
        %v644 = vld [vmem:[%s402 + $0x140] sm:$0xff]
        %v645 = vld [vmem:[%s402 + $0x148] sm:$0xff]
        %v646 = vld [vmem:[%s402 + $0x150] sm:$0xff]
        %v647 = vld [vmem:[%s402 + $0x158] sm:$0xff]
        %v648 = vld [vmem:[%s402 + $0x160] sm:$0xff]
        %v649 = vld [vmem:[%s402 + $0x168] sm:$0xff]
        %v650 = vld [vmem:[%s402 + $0x170] sm:$0xff]
        %v651 = vld [vmem:[%s402 + $0x178] sm:$0xff]
        %v652 = vld [vmem:[%s402 + $0x180] sm:$0xff]
        %v653 = vld [vmem:[%s402 + $0x188] sm:$0xff]
        %v654 = vld [vmem:[%s402 + $0x190] sm:$0xff]
        %v655 = vld [vmem:[%s402 + $0x198] sm:$0xff]
        %v656 = vld [vmem:[%s402 + $0x1a0] sm:$0xff]
        %v657 = vld [vmem:[%s402 + $0x1a8] sm:$0xff]
        %v658 = vld [vmem:[%s402 + $0x1b0] sm:$0xff]
        %v659 = vld [vmem:[%s402 + $0x1b8] sm:$0xff]
        %v660 = vld [vmem:[%s402 + $0x1c0] sm:$0xff]
        %v661 = vld [vmem:[%s402 + $0x1c8] sm:$0xff]
        %v662 = vld [vmem:[%s402 + $0x1d0] sm:$0xff]
        %v663 = vld [vmem:[%s402 + $0x1d8] sm:$0xff]
        %v664 = vld [vmem:[%s402 + $0x1e0] sm:$0xff]
        %v665 = vld [vmem:[%s402 + $0x1e8] sm:$0xff]
        %v666 = vld [vmem:[%s402 + $0x1f0] sm:$0xff]
        %v667 = vld [vmem:[%s402 + $0x1f8] sm:$0xff]
        %v668 = vld [vmem:[%s402 + $0x200] sm:$0xff]
        %v669 = vld [vmem:[%s402 + $0x208] sm:$0xff]
        %v670 = vld [vmem:[%s402 + $0x210] sm:$0xff]
        %v671 = vld [vmem:[%s402 + $0x218] sm:$0xff]
        %v672 = vld [vmem:[%s402 + $0x220] sm:$0xff]
        %v673 = vld [vmem:[%s402 + $0x228] sm:$0xff]
        %v674 = vld [vmem:[%s402 + $0x230] sm:$0xff]
        %v675 = vld [vmem:[%s402 + $0x238] sm:$0xff]
        %v676 = vld [vmem:[%s402 + $0x240] sm:$0xff]
        %v677 = vld [vmem:[%s402 + $0x248] sm:$0xff]
        %v678 = vld [vmem:[%s402 + $0x250] sm:$0xff]
        %v679 = vld [vmem:[%s402 + $0x258] sm:$0xff]
        %v680 = vld [vmem:[%s402 + $0x260] sm:$0xff]
        %v681 = vld [vmem:[%s402 + $0x268] sm:$0xff]
        %v682 = vld [vmem:[%s402 + $0x270] sm:$0xff]
        %v683 = vld [vmem:[%s402 + $0x278] sm:$0xff]
        %v684 = vld [vmem:[%s402 + $0x280] sm:$0xff]
        %v685 = vld [vmem:[%s402 + $0x288] sm:$0xff]
        %v686 = vld [vmem:[%s402 + $0x290] sm:$0xff]
        %v687 = vld [vmem:[%s402 + $0x298] sm:$0xff]
        %v688 = vld [vmem:[%s402 + $0x2a0] sm:$0xff]
        %v689 = vld [vmem:[%s402 + $0x2a8] sm:$0xff]
        %v690 = vld [vmem:[%s402 + $0x2b0] sm:$0xff]
        %v691 = vld [vmem:[%s402 + $0x2b8] sm:$0xff]
        %v692 = vld [vmem:[%s402 + $0x2c0] sm:$0xff]
        %v693 = vld [vmem:[%s402 + $0x2c8] sm:$0xff]
        %v694 = vld [vmem:[%s402 + $0x2d0] sm:$0xff]
        %v695 = vld [vmem:[%s402 + $0x2d8] sm:$0xff]
        %v696 = vld [vmem:[%s402 + $0x2e0] sm:$0xff]
        %v697 = vld [vmem:[%s402 + $0x2e8] sm:$0xff]
        %v698 = vld [vmem:[%s402 + $0x2f0] sm:$0xff]
        %v699 = vld [vmem:[%s402 + $0x2f8] sm:$0xff]
        %v700 = vld [vmem:[%s402 + $0x300] sm:$0xff]
        %v701 = vld [vmem:[%s402 + $0x308] sm:$0xff]
        %v702 = vld [vmem:[%s402 + $0x310] sm:$0xff]
        %v703 = vld [vmem:[%s402 + $0x318] sm:$0xff]
        %v704 = vld [vmem:[%s402 + $0x320] sm:$0xff]
        %v705 = vld [vmem:[%s402 + $0x328] sm:$0xff]
        %v706 = vld [vmem:[%s402 + $0x330] sm:$0xff]
        %v707 = vld [vmem:[%s402 + $0x338] sm:$0xff]
        %v708 = vld [vmem:[%s402 + $0x340] sm:$0xff]
        %v709 = vld [vmem:[%s402 + $0x348] sm:$0xff]
        %v710 = vld [vmem:[%s402 + $0x350] sm:$0xff]
        %v711 = vld [vmem:[%s402 + $0x358] sm:$0xff]
        %v712 = vld [vmem:[%s402 + $0x360] sm:$0xff]
        %v713 = vld [vmem:[%s402 + $0x368] sm:$0xff]
        %v714 = vld [vmem:[%s402 + $0x370] sm:$0xff]
        %v715 = vld [vmem:[%s402 + $0x378] sm:$0xff]
        %v716 = vld [vmem:[%s402 + $0x380] sm:$0xff]
        %v717 = vld [vmem:[%s402 + $0x388] sm:$0xff]
        %v718 = vld [vmem:[%s402 + $0x390] sm:$0xff]
        %v719 = vld [vmem:[%s402 + $0x398] sm:$0xff]
        %v720 = vld [vmem:[%s402 + $0x3a0] sm:$0xff]
        %v721 = vld [vmem:[%s402 + $0x3a8] sm:$0xff]
        %v722 = vld [vmem:[%s402 + $0x3b0] sm:$0xff]
        %v723 = vld [vmem:[%s402 + $0x3b8] sm:$0xff]
        %v724 = vld [vmem:[%s402 + $0x3c0] sm:$0xff]
        %v725 = vld [vmem:[%s402 + $0x3c8] sm:$0xff]
        %v726 = vld [vmem:[%s402 + $0x3d0] sm:$0xff]
        %v727 = vld [vmem:[%s402 + $0x3d8] sm:$0xff]
        %v728 = vld [vmem:[%s402 + $0x3e0] sm:$0xff]
        %v729 = vld [vmem:[%s402 + $0x3e8] sm:$0xff]
        %v730 = vld [vmem:[%s402 + $0x3f0] sm:$0xff]
        %v731 = vld [vmem:[%s402 + $0x3f8] sm:$0xff]
        %v732 = vpack.c.bf16 %v606, %v604
        %v733 = vpack.c.bf16 %v607, %v605
        %v734 = vpack.c.bf16 %v610, %v608
        %v735 = vpack.c.bf16 %v611, %v609
        %v736 = vpack.c.bf16 %v614, %v612
        %v737 = vpack.c.bf16 %v615, %v613
        %v738 = vpack.c.bf16 %v618, %v616
        %v739 = vpack.c.bf16 %v619, %v617
        %v740 = vpack.c.bf16 %v622, %v620
        %v741 = vpack.c.bf16 %v623, %v621
        %v742 = vpack.c.bf16 %v626, %v624
        %v743 = vpack.c.bf16 %v627, %v625
        %v744 = vpack.c.bf16 %v630, %v628
        %v745 = vpack.c.bf16 %v631, %v629
        %v746 = vpack.c.bf16 %v634, %v632
        %v747 = vpack.c.bf16 %v635, %v633
        %v748 = vpack.c.bf16 %v638, %v636
        %v749 = vpack.c.bf16 %v639, %v637
        %v750 = vpack.c.bf16 %v642, %v640
        %v751 = vpack.c.bf16 %v643, %v641
        %v752 = vpack.c.bf16 %v646, %v644
        %v753 = vpack.c.bf16 %v647, %v645
        %v754 = vpack.c.bf16 %v650, %v648
        %v755 = vpack.c.bf16 %v651, %v649
        %v756 = vpack.c.bf16 %v654, %v652
        %v757 = vpack.c.bf16 %v655, %v653
        %v758 = vpack.c.bf16 %v658, %v656
        %v759 = vpack.c.bf16 %v659, %v657
        %v760 = vpack.c.bf16 %v662, %v660
        %v761 = vpack.c.bf16 %v663, %v661
        %v762 = vpack.c.bf16 %v666, %v664
        %v763 = vpack.c.bf16 %v667, %v665
        %v764 = vpack.c.bf16 %v670, %v668
        %v765 = vpack.c.bf16 %v671, %v669
        %v766 = vpack.c.bf16 %v674, %v672
        %v767 = vpack.c.bf16 %v675, %v673
        %v768 = vpack.c.bf16 %v678, %v676
        %v769 = vpack.c.bf16 %v679, %v677
        %v770 = vpack.c.bf16 %v682, %v680
        %v771 = vpack.c.bf16 %v683, %v681
        %v772 = vpack.c.bf16 %v686, %v684
        %v773 = vpack.c.bf16 %v687, %v685
        %v774 = vpack.c.bf16 %v690, %v688
        %v775 = vpack.c.bf16 %v691, %v689
        %v776 = vpack.c.bf16 %v694, %v692
        %v777 = vpack.c.bf16 %v695, %v693
        %v778 = vpack.c.bf16 %v698, %v696
        %v779 = vpack.c.bf16 %v699, %v697
        %v780 = vpack.c.bf16 %v702, %v700
        %v781 = vpack.c.bf16 %v703, %v701
        %v782 = vpack.c.bf16 %v706, %v704
        %v783 = vpack.c.bf16 %v707, %v705
        %v784 = vpack.c.bf16 %v710, %v708
        %v785 = vpack.c.bf16 %v711, %v709
        %v786 = vpack.c.bf16 %v714, %v712
        %v787 = vpack.c.bf16 %v715, %v713
        %v788 = vpack.c.bf16 %v718, %v716
        %v789 = vpack.c.bf16 %v719, %v717
        %v790 = vpack.c.bf16 %v722, %v720
        %v791 = vpack.c.bf16 %v723, %v721
        %v792 = vpack.c.bf16 %v726, %v724
        %v793 = vpack.c.bf16 %v727, %v725
        %v794 = vpack.c.bf16 %v730, %v728
        %v795 = vpack.c.bf16 %v731, %v729
        %p796 = scmp.eq.s32.totalorder %s20, 0
        // Predicated region
        $region59: #{tpu_custom_call.1} parent=53 // pred_check
          %p797 = pneg %p796
        $region60: #{tpu_custom_call.1} parent=53 // pred_check_branch
          %799 = sbr.rel (%p797) target = $region62
        $region61: #{tpu_custom_call.1} parent=53 // pred_region
          %800 = vst [vmem:[#allocation2] sm:$0xff] 0.0
          %vm801 = vcmask 588800
          %802 = vst.msk [vmem:[#allocation2 + $0x8] sm:$0xff] %vm801, 0.0
          %803 = vst [vmem:[#allocation2 + $0x10] sm:$0xff] 0.0
          %804 = vst.msk [vmem:[#allocation2 + $0x18] sm:$0xff] %vm801, 0.0
          %805 = vst [vmem:[#allocation2 + $0x20] sm:$0xff] 0.0
          %806 = vst.msk [vmem:[#allocation2 + $0x28] sm:$0xff] %vm801, 0.0
          %807 = vst [vmem:[#allocation2 + $0x30] sm:$0xff] 0.0
          %808 = vst.msk [vmem:[#allocation2 + $0x38] sm:$0xff] %vm801, 0.0
          %809 = vst [vmem:[#allocation2 + $0x40] sm:$0xff] 0.0
          %810 = vst.msk [vmem:[#allocation2 + $0x48] sm:$0xff] %vm801, 0.0
          %811 = vst [vmem:[#allocation2 + $0x50] sm:$0xff] 0.0
          %812 = vst.msk [vmem:[#allocation2 + $0x58] sm:$0xff] %vm801, 0.0
          %813 = vst [vmem:[#allocation2 + $0x60] sm:$0xff] 0.0
          %814 = vst.msk [vmem:[#allocation2 + $0x68] sm:$0xff] %vm801, 0.0
          %815 = vst [vmem:[#allocation2 + $0x70] sm:$0xff] 0.0
          %816 = vst.msk [vmem:[#allocation2 + $0x78] sm:$0xff] %vm801, 0.0
          %817 = vst [vmem:[#allocation2 + $0x80] sm:$0xff] 0.0
          %818 = vst.msk [vmem:[#allocation2 + $0x88] sm:$0xff] %vm801, 0.0
          %819 = vst [vmem:[#allocation2 + $0x90] sm:$0xff] 0.0
          %820 = vst.msk [vmem:[#allocation2 + $0x98] sm:$0xff] %vm801, 0.0
          %821 = vst [vmem:[#allocation2 + $0xa0] sm:$0xff] 0.0
          %822 = vst.msk [vmem:[#allocation2 + $0xa8] sm:$0xff] %vm801, 0.0
          %823 = vst [vmem:[#allocation2 + $0xb0] sm:$0xff] 0.0
          %824 = vst.msk [vmem:[#allocation2 + $0xb8] sm:$0xff] %vm801, 0.0
          %825 = vst [vmem:[#allocation2 + $0xc0] sm:$0xff] 0.0
          %826 = vst.msk [vmem:[#allocation2 + $0xc8] sm:$0xff] %vm801, 0.0
          %827 = vst [vmem:[#allocation2 + $0xd0] sm:$0xff] 0.0
          %828 = vst.msk [vmem:[#allocation2 + $0xd8] sm:$0xff] %vm801, 0.0
          %829 = vst [vmem:[#allocation2 + $0xe0] sm:$0xff] 0.0
          %830 = vst.msk [vmem:[#allocation2 + $0xe8] sm:$0xff] %vm801, 0.0
          %831 = vst [vmem:[#allocation2 + $0xf0] sm:$0xff] 0.0
          %832 = vst.msk [vmem:[#allocation2 + $0xf8] sm:$0xff] %vm801, 0.0
          %833 = vst [vmem:[#allocation2 + $0x100] sm:$0xff] 0.0
          %834 = vst.msk [vmem:[#allocation2 + $0x108] sm:$0xff] %vm801, 0.0
          %835 = vst [vmem:[#allocation2 + $0x110] sm:$0xff] 0.0
          %836 = vst.msk [vmem:[#allocation2 + $0x118] sm:$0xff] %vm801, 0.0
          %837 = vst [vmem:[#allocation2 + $0x120] sm:$0xff] 0.0
          %838 = vst.msk [vmem:[#allocation2 + $0x128] sm:$0xff] %vm801, 0.0
          %839 = vst [vmem:[#allocation2 + $0x130] sm:$0xff] 0.0
          %840 = vst.msk [vmem:[#allocation2 + $0x138] sm:$0xff] %vm801, 0.0
          %841 = vst [vmem:[#allocation2 + $0x140] sm:$0xff] 0.0
          %842 = vst.msk [vmem:[#allocation2 + $0x148] sm:$0xff] %vm801, 0.0
          %843 = vst [vmem:[#allocation2 + $0x150] sm:$0xff] 0.0
          %844 = vst.msk [vmem:[#allocation2 + $0x158] sm:$0xff] %vm801, 0.0
          %845 = vst [vmem:[#allocation2 + $0x160] sm:$0xff] 0.0
          %846 = vst.msk [vmem:[#allocation2 + $0x168] sm:$0xff] %vm801, 0.0
          %847 = vst [vmem:[#allocation2 + $0x170] sm:$0xff] 0.0
          %848 = vst.msk [vmem:[#allocation2 + $0x178] sm:$0xff] %vm801, 0.0
          %849 = vst [vmem:[#allocation2 + $0x180] sm:$0xff] 0.0
          %850 = vst.msk [vmem:[#allocation2 + $0x188] sm:$0xff] %vm801, 0.0
          %851 = vst [vmem:[#allocation2 + $0x190] sm:$0xff] 0.0
          %852 = vst.msk [vmem:[#allocation2 + $0x198] sm:$0xff] %vm801, 0.0
          %853 = vst [vmem:[#allocation2 + $0x1a0] sm:$0xff] 0.0
          %854 = vst.msk [vmem:[#allocation2 + $0x1a8] sm:$0xff] %vm801, 0.0
          %855 = vst [vmem:[#allocation2 + $0x1b0] sm:$0xff] 0.0
          %856 = vst.msk [vmem:[#allocation2 + $0x1b8] sm:$0xff] %vm801, 0.0
          %857 = vst [vmem:[#allocation2 + $0x1c0] sm:$0xff] 0.0
          %858 = vst.msk [vmem:[#allocation2 + $0x1c8] sm:$0xff] %vm801, 0.0
          %859 = vst [vmem:[#allocation2 + $0x1d0] sm:$0xff] 0.0
          %860 = vst.msk [vmem:[#allocation2 + $0x1d8] sm:$0xff] %vm801, 0.0
          %861 = vst [vmem:[#allocation2 + $0x1e0] sm:$0xff] 0.0
          %862 = vst.msk [vmem:[#allocation2 + $0x1e8] sm:$0xff] %vm801, 0.0
          %863 = vst [vmem:[#allocation2 + $0x1f0] sm:$0xff] 0.0
          %864 = vst.msk [vmem:[#allocation2 + $0x1f8] sm:$0xff] %vm801, 0.0
        $region62: #{tpu_custom_call.1} parent=53 // pred_fallthru
          _
        %v865 = vld [vmem:[#allocation2] sm:$0xff]
        %v866 = vld [vmem:[#allocation2 + $0x8] sm:$0xff]
        %v867 = vld [vmem:[#allocation2 + $0x10] sm:$0xff]
        %v868 = vld [vmem:[#allocation2 + $0x18] sm:$0xff]
        %v869 = vld [vmem:[#allocation2 + $0x20] sm:$0xff]
        %v870 = vld [vmem:[#allocation2 + $0x28] sm:$0xff]
        %v871 = vld [vmem:[#allocation2 + $0x30] sm:$0xff]
        %v872 = vld [vmem:[#allocation2 + $0x38] sm:$0xff]
        %v873 = vld [vmem:[#allocation2 + $0x40] sm:$0xff]
        %v874 = vld [vmem:[#allocation2 + $0x48] sm:$0xff]
        %v875 = vld [vmem:[#allocation2 + $0x50] sm:$0xff]
        %v876 = vld [vmem:[#allocation2 + $0x58] sm:$0xff]
        %v877 = vld [vmem:[#allocation2 + $0x60] sm:$0xff]
        %v878 = vld [vmem:[#allocation2 + $0x68] sm:$0xff]
        %v879 = vld [vmem:[#allocation2 + $0x70] sm:$0xff]
        %v880 = vld [vmem:[#allocation2 + $0x78] sm:$0xff]
        %v881 = vld [vmem:[#allocation2 + $0x80] sm:$0xff]
        %v882 = vld [vmem:[#allocation2 + $0x88] sm:$0xff]
        %v883 = vld [vmem:[#allocation2 + $0x90] sm:$0xff]
        %v884 = vld [vmem:[#allocation2 + $0x98] sm:$0xff]
        %v885 = vld [vmem:[#allocation2 + $0xa0] sm:$0xff]
        %v886 = vld [vmem:[#allocation2 + $0xa8] sm:$0xff]
        %v887 = vld [vmem:[#allocation2 + $0xb0] sm:$0xff]
        %v888 = vld [vmem:[#allocation2 + $0xb8] sm:$0xff]
        %v889 = vld [vmem:[#allocation2 + $0xc0] sm:$0xff]
        %v890 = vld [vmem:[#allocation2 + $0xc8] sm:$0xff]
        %v891 = vld [vmem:[#allocation2 + $0xd0] sm:$0xff]
        %v892 = vld [vmem:[#allocation2 + $0xd8] sm:$0xff]
        %v893 = vld [vmem:[#allocation2 + $0xe0] sm:$0xff]
        %v894 = vld [vmem:[#allocation2 + $0xe8] sm:$0xff]
        %v895 = vld [vmem:[#allocation2 + $0xf0] sm:$0xff]
        %v896 = vld [vmem:[#allocation2 + $0xf8] sm:$0xff]
        %v897 = vld [vmem:[#allocation2 + $0x100] sm:$0xff]
        %v898 = vld [vmem:[#allocation2 + $0x108] sm:$0xff]
        %v899 = vld [vmem:[#allocation2 + $0x110] sm:$0xff]
        %v900 = vld [vmem:[#allocation2 + $0x118] sm:$0xff]
        %v901 = vld [vmem:[#allocation2 + $0x120] sm:$0xff]
        %v902 = vld [vmem:[#allocation2 + $0x128] sm:$0xff]
        %v903 = vld [vmem:[#allocation2 + $0x130] sm:$0xff]
        %v904 = vld [vmem:[#allocation2 + $0x138] sm:$0xff]
        %v905 = vld [vmem:[#allocation2 + $0x140] sm:$0xff]
        %v906 = vld [vmem:[#allocation2 + $0x148] sm:$0xff]
        %v907 = vld [vmem:[#allocation2 + $0x150] sm:$0xff]
        %v908 = vld [vmem:[#allocation2 + $0x158] sm:$0xff]
        %v909 = vld [vmem:[#allocation2 + $0x160] sm:$0xff]
        %v910 = vld [vmem:[#allocation2 + $0x168] sm:$0xff]
        %v911 = vld [vmem:[#allocation2 + $0x170] sm:$0xff]
        %v912 = vld [vmem:[#allocation2 + $0x178] sm:$0xff]
        %v913 = vld [vmem:[#allocation2 + $0x180] sm:$0xff]
        %v914 = vld [vmem:[#allocation2 + $0x188] sm:$0xff]
        %v915 = vld [vmem:[#allocation2 + $0x190] sm:$0xff]
        %v916 = vld [vmem:[#allocation2 + $0x198] sm:$0xff]
        %v917 = vld [vmem:[#allocation2 + $0x1a0] sm:$0xff]
        %v918 = vld [vmem:[#allocation2 + $0x1a8] sm:$0xff]
        %v919 = vld [vmem:[#allocation2 + $0x1b0] sm:$0xff]
        %v920 = vld [vmem:[#allocation2 + $0x1b8] sm:$0xff]
        %v921 = vld [vmem:[#allocation2 + $0x1c0] sm:$0xff]
        %v922 = vld [vmem:[#allocation2 + $0x1c8] sm:$0xff]
        %v923 = vld [vmem:[#allocation2 + $0x1d0] sm:$0xff]
        %v924 = vld [vmem:[#allocation2 + $0x1d8] sm:$0xff]
        %v925 = vld [vmem:[#allocation2 + $0x1e0] sm:$0xff]
        %v926 = vld [vmem:[#allocation2 + $0x1e8] sm:$0xff]
        %v927 = vld [vmem:[#allocation2 + $0x1f0] sm:$0xff]
        %v928 = vld [vmem:[#allocation2 + $0x1f8] sm:$0xff]
        %929 = vmatprep.subr.bf16.mxu0 %v733
        %930 = vmatpush1.bf16.msra.mxu0 %v732
        %931 = vmatprep.subr.bf16.mxu0 %v735
        %932 = vmatpush1.bf16.msra.mxu0 %v734
        %933 = vmatprep.subr.bf16.mxu0 %v737
        %934 = vmatpush1.bf16.msra.mxu0 %v736
        %935 = vmatprep.subr.bf16.mxu0 %v739
        %936 = vmatpush1.bf16.msra.mxu0 %v738
        %937 = vmatprep.subr.bf16.mxu0 %v741
        %938 = vmatpush1.bf16.msra.mxu0 %v740
        %939 = vmatprep.subr.bf16.mxu0 %v743
        %940 = vmatpush1.bf16.msra.mxu0 %v742
        %941 = vmatprep.subr.bf16.mxu0 %v745
        %942 = vmatpush1.bf16.msra.mxu0 %v744
        %943 = vmatprep.subr.bf16.mxu0 %v747
        %944 = vmatpush1.bf16.msra.mxu0 %v746
        %945 = vmatprep.subr.bf16.mxu0 %v749
        %946 = vmatpush1.bf16.msra.mxu0 %v748
        %947 = vmatprep.subr.bf16.mxu0 %v751
        %948 = vmatpush1.bf16.msra.mxu0 %v750
        %949 = vmatprep.subr.bf16.mxu0 %v753
        %950 = vmatpush1.bf16.msra.mxu0 %v752
        %951 = vmatprep.subr.bf16.mxu0 %v755
        %952 = vmatpush1.bf16.msra.mxu0 %v754
        %953 = vmatprep.subr.bf16.mxu0 %v757
        %954 = vmatpush1.bf16.msra.mxu0 %v756
        %955 = vmatprep.subr.bf16.mxu0 %v759
        %956 = vmatpush1.bf16.msra.mxu0 %v758
        %957 = vmatprep.subr.bf16.mxu0 %v761
        %958 = vmatpush1.bf16.msra.mxu0 %v760
        %959 = vmatprep.subr.bf16.mxu0 %v763
        %960 = vmatpush1.bf16.msra.mxu0 %v762
        %961 = vmatprep.mubr.bf16.mxu0 %v541
        %962 = vmatmul.mubr.bf16.gmra.mrb[0].mxu0 %v540
        %v963 = vpop.f32.mrb[0].mxu0
        %v964 = vadd.f32 0.0, %v963
        %v965 = vpop.f32.mrb[0].mxu0
        %v966 = vadd.f32 0.0, %v965
        %v967 = vpop.f32.mrb[0].mxu0
        %v968 = vadd.f32 0.0, %v967
        %v969 = vpop.f32.mrb[0].mxu0
        %v970 = vadd.f32 0.0, %v969
        %971 = vmatprep.mubr.bf16.mxu0 %v545
        %972 = vmatmul.mubr.bf16.gmra.mrb[0].mxu0 %v544
        %v973 = vpop.f32.mrb[0].mxu0
        %v974 = vadd.f32 0.0, %v973
        %v975 = vpop.f32.mrb[0].mxu0
        %v976 = vadd.f32 0.0, %v975
        %v977 = vpop.f32.mrb[0].mxu0
        %v978 = vadd.f32 0.0, %v977
        %v979 = vpop.f32.mrb[0].mxu0
        %v980 = vadd.f32 0.0, %v979
        %981 = vmatprep.mubr.bf16.mxu0 %v549
        %982 = vmatmul.mubr.bf16.gmra.mrb[0].mxu0 %v548
        %v983 = vpop.f32.mrb[0].mxu0
        %v984 = vadd.f32 0.0, %v983
        %v985 = vpop.f32.mrb[0].mxu0
        %v986 = vadd.f32 0.0, %v985
        %v987 = vpop.f32.mrb[0].mxu0
        %v988 = vadd.f32 0.0, %v987
        %v989 = vpop.f32.mrb[0].mxu0
        %v990 = vadd.f32 0.0, %v989
        %991 = vmatprep.mubr.bf16.mxu0 %v553
        %992 = vmatmul.mubr.bf16.gmra.mrb[0].mxu0 %v552
        %v993 = vpop.f32.mrb[0].mxu0
        %v994 = vadd.f32 0.0, %v993
        %v995 = vpop.f32.mrb[0].mxu0
        %v996 = vadd.f32 0.0, %v995
        %v997 = vpop.f32.mrb[0].mxu0
        %v998 = vadd.f32 0.0, %v997
        %v999 = vpop.f32.mrb[0].mxu0
        %v1000 = vadd.f32 0.0, %v999
        %1001 = vmatprep.mubr.bf16.mxu0 %v557
        %1002 = vmatmul.mubr.bf16.gmra.mrb[0].mxu0 %v556
        %v1003 = vpop.f32.mrb[0].mxu0
        %v1004 = vadd.f32 0.0, %v1003
        %v1005 = vpop.f32.mrb[0].mxu0
        %v1006 = vadd.f32 0.0, %v1005
        %v1007 = vpop.f32.mrb[0].mxu0
        %v1008 = vadd.f32 0.0, %v1007
        %v1009 = vpop.f32.mrb[0].mxu0
        %v1010 = vadd.f32 0.0, %v1009
        %1011 = vmatprep.mubr.bf16.mxu0 %v561
        %1012 = vmatmul.mubr.bf16.gmra.mrb[0].mxu0 %v560
        %v1013 = vpop.f32.mrb[0].mxu0
        %v1014 = vadd.f32 0.0, %v1013
        %v1015 = vpop.f32.mrb[0].mxu0
        %v1016 = vadd.f32 0.0, %v1015
        %v1017 = vpop.f32.mrb[0].mxu0
        %v1018 = vadd.f32 0.0, %v1017
        %v1019 = vpop.f32.mrb[0].mxu0
        %v1020 = vadd.f32 0.0, %v1019
        %1021 = vmatprep.mubr.bf16.mxu0 %v565
        %1022 = vmatmul.mubr.bf16.gmra.mrb[0].mxu0 %v564
        %v1023 = vpop.f32.mrb[0].mxu0
        %v1024 = vadd.f32 0.0, %v1023
        %v1025 = vpop.f32.mrb[0].mxu0
        %v1026 = vadd.f32 0.0, %v1025
        %v1027 = vpop.f32.mrb[0].mxu0
        %v1028 = vadd.f32 0.0, %v1027
        %v1029 = vpop.f32.mrb[0].mxu0
        %v1030 = vadd.f32 0.0, %v1029
        %1031 = vmatprep.mubr.bf16.mxu0 %v569
        %1032 = vmatmul.mubr.bf16.gmra.mrb[0].mxu0 %v568
        %v1033 = vpop.f32.mrb[0].mxu0
        %v1034 = vadd.f32 0.0, %v1033
        %v1035 = vpop.f32.mrb[0].mxu0
        %v1036 = vadd.f32 0.0, %v1035
        %v1037 = vpop.f32.mrb[0].mxu0
        %v1038 = vadd.f32 0.0, %v1037
        %v1039 = vpop.f32.mrb[0].mxu0
        %v1040 = vadd.f32 0.0, %v1039
        %1041 = vmatprep.mubr.bf16.mxu0 %v573
        %1042 = vmatmul.mubr.bf16.gmra.mrb[0].mxu0 %v572
        %v1043 = vpop.f32.mrb[0].mxu0
        %v1044 = vadd.f32 0.0, %v1043
        %v1045 = vpop.f32.mrb[0].mxu0
        %v1046 = vadd.f32 0.0, %v1045
        %v1047 = vpop.f32.mrb[0].mxu0
        %v1048 = vadd.f32 0.0, %v1047
        %v1049 = vpop.f32.mrb[0].mxu0
        %v1050 = vadd.f32 0.0, %v1049
        %1051 = vmatprep.mubr.bf16.mxu0 %v577
        %1052 = vmatmul.mubr.bf16.gmra.mrb[0].mxu0 %v576
        %v1053 = vpop.f32.mrb[0].mxu0
        %v1054 = vadd.f32 0.0, %v1053
        %v1055 = vpop.f32.mrb[0].mxu0
        %v1056 = vadd.f32 0.0, %v1055
        %v1057 = vpop.f32.mrb[0].mxu0
        %v1058 = vadd.f32 0.0, %v1057
        %v1059 = vpop.f32.mrb[0].mxu0
        %v1060 = vadd.f32 0.0, %v1059
        %1061 = vmatprep.mubr.bf16.mxu0 %v581
        %1062 = vmatmul.mubr.bf16.gmra.mrb[0].mxu0 %v580
        %v1063 = vpop.f32.mrb[0].mxu0
        %v1064 = vadd.f32 0.0, %v1063
        %v1065 = vpop.f32.mrb[0].mxu0
        %v1066 = vadd.f32 0.0, %v1065
        %v1067 = vpop.f32.mrb[0].mxu0
        %v1068 = vadd.f32 0.0, %v1067
        %v1069 = vpop.f32.mrb[0].mxu0
        %v1070 = vadd.f32 0.0, %v1069
        %1071 = vmatprep.mubr.bf16.mxu0 %v585
        %1072 = vmatmul.mubr.bf16.gmra.mrb[0].mxu0 %v584
        %v1073 = vpop.f32.mrb[0].mxu0
        %v1074 = vadd.f32 0.0, %v1073
        %v1075 = vpop.f32.mrb[0].mxu0
        %v1076 = vadd.f32 0.0, %v1075
        %v1077 = vpop.f32.mrb[0].mxu0
        %v1078 = vadd.f32 0.0, %v1077
        %v1079 = vpop.f32.mrb[0].mxu0
        %v1080 = vadd.f32 0.0, %v1079
        %1081 = vmatprep.mubr.bf16.mxu0 %v589
        %1082 = vmatmul.mubr.bf16.gmra.mrb[0].mxu0 %v588
        %v1083 = vpop.f32.mrb[0].mxu0
        %v1084 = vadd.f32 0.0, %v1083
        %v1085 = vpop.f32.mrb[0].mxu0
        %v1086 = vadd.f32 0.0, %v1085
        %v1087 = vpop.f32.mrb[0].mxu0
        %v1088 = vadd.f32 0.0, %v1087
        %v1089 = vpop.f32.mrb[0].mxu0
        %v1090 = vadd.f32 0.0, %v1089
        %1091 = vmatprep.mubr.bf16.mxu0 %v593
        %1092 = vmatmul.mubr.bf16.gmra.mrb[0].mxu0 %v592
        %v1093 = vpop.f32.mrb[0].mxu0
        %v1094 = vadd.f32 0.0, %v1093
        %v1095 = vpop.f32.mrb[0].mxu0
        %v1096 = vadd.f32 0.0, %v1095
        %v1097 = vpop.f32.mrb[0].mxu0
        %v1098 = vadd.f32 0.0, %v1097
        %v1099 = vpop.f32.mrb[0].mxu0
        %v1100 = vadd.f32 0.0, %v1099
        %1101 = vmatprep.mubr.bf16.mxu0 %v597
        %1102 = vmatmul.mubr.bf16.gmra.mrb[0].mxu0 %v596
        %v1103 = vpop.f32.mrb[0].mxu0
        %v1104 = vadd.f32 0.0, %v1103
        %v1105 = vpop.f32.mrb[0].mxu0
        %v1106 = vadd.f32 0.0, %v1105
        %v1107 = vpop.f32.mrb[0].mxu0
        %v1108 = vadd.f32 0.0, %v1107
        %v1109 = vpop.f32.mrb[0].mxu0
        %v1110 = vadd.f32 0.0, %v1109
        %1111 = vmatprep.mubr.bf16.mxu0 %v601
        %1112 = vmatmul.mubr.bf16.gmra.mrb[0].mxu0 %v600
        %v1113 = vpop.f32.mrb[0].mxu0
        %v1114 = vadd.f32 0.0, %v1113
        %v1115 = vpop.f32.mrb[0].mxu0
        %v1116 = vadd.f32 0.0, %v1115
        %v1117 = vpop.f32.mrb[0].mxu0
        %v1118 = vadd.f32 0.0, %v1117
        %v1119 = vpop.f32.mrb[0].mxu0
        %v1120 = vadd.f32 0.0, %v1119
        %1121 = vdwg.mxu0
        %1122 = vmatprep.subr.bf16.mxu0 %v765
        %1123 = vmatpush1.bf16.msra.mxu0 %v764
        %1124 = vmatprep.subr.bf16.mxu0 %v767
        %1125 = vmatpush1.bf16.msra.mxu0 %v766
        %1126 = vmatprep.subr.bf16.mxu0 %v769
        %1127 = vmatpush1.bf16.msra.mxu0 %v768
        %1128 = vmatprep.subr.bf16.mxu0 %v771
        %1129 = vmatpush1.bf16.msra.mxu0 %v770
        %1130 = vmatprep.subr.bf16.mxu0 %v773
        %1131 = vmatpush1.bf16.msra.mxu0 %v772
        %1132 = vmatprep.subr.bf16.mxu0 %v775
        %1133 = vmatpush1.bf16.msra.mxu0 %v774
        %1134 = vmatprep.subr.bf16.mxu0 %v777
        %1135 = vmatpush1.bf16.msra.mxu0 %v776
        %1136 = vmatprep.subr.bf16.mxu0 %v779
        %1137 = vmatpush1.bf16.msra.mxu0 %v778
        %1138 = vmatprep.subr.bf16.mxu0 %v781
        %1139 = vmatpush1.bf16.msra.mxu0 %v780
        %1140 = vmatprep.subr.bf16.mxu0 %v783
        %1141 = vmatpush1.bf16.msra.mxu0 %v782
        %1142 = vmatprep.subr.bf16.mxu0 %v785
        %1143 = vmatpush1.bf16.msra.mxu0 %v784
        %1144 = vmatprep.subr.bf16.mxu0 %v787
        %1145 = vmatpush1.bf16.msra.mxu0 %v786
        %1146 = vmatprep.subr.bf16.mxu0 %v789
        %1147 = vmatpush1.bf16.msra.mxu0 %v788
        %1148 = vmatprep.subr.bf16.mxu0 %v791
        %1149 = vmatpush1.bf16.msra.mxu0 %v790
        %1150 = vmatprep.subr.bf16.mxu0 %v793
        %1151 = vmatpush1.bf16.msra.mxu0 %v792
        %1152 = vmatprep.subr.bf16.mxu0 %v795
        %1153 = vmatpush1.bf16.msra.mxu0 %v794
        %1154 = vmatprep.mubr.bf16.mxu0 %v543
        %1155 = vmatmul.mubr.bf16.gmra.mrb[0].mxu0 %v542
        %v1156 = vpop.f32.mrb[0].mxu0
        %v1157 = vadd.f32 %v964, %v1156
        %v1158 = vpop.f32.mrb[0].mxu0
        %v1159 = vadd.f32 %v966, %v1158
        %v1160 = vpop.f32.mrb[0].mxu0
        %v1161 = vadd.f32 %v968, %v1160
        %v1162 = vpop.f32.mrb[0].mxu0
        %v1163 = vadd.f32 %v970, %v1162
        %1164 = vmatprep.mubr.bf16.mxu0 %v547
        %1165 = vmatmul.mubr.bf16.gmra.mrb[0].mxu0 %v546
        %v1166 = vpop.f32.mrb[0].mxu0
        %v1167 = vadd.f32 %v974, %v1166
        %v1168 = vpop.f32.mrb[0].mxu0
        %v1169 = vadd.f32 %v976, %v1168
        %v1170 = vpop.f32.mrb[0].mxu0
        %v1171 = vadd.f32 %v978, %v1170
        %v1172 = vpop.f32.mrb[0].mxu0
        %v1173 = vadd.f32 %v980, %v1172
        %1174 = vmatprep.mubr.bf16.mxu0 %v551
        %1175 = vmatmul.mubr.bf16.gmra.mrb[0].mxu0 %v550
        %v1176 = vpop.f32.mrb[0].mxu0
        %v1177 = vadd.f32 %v984, %v1176
        %v1178 = vpop.f32.mrb[0].mxu0
        %v1179 = vadd.f32 %v986, %v1178
        %v1180 = vpop.f32.mrb[0].mxu0
        %v1181 = vadd.f32 %v988, %v1180
        %v1182 = vpop.f32.mrb[0].mxu0
        %v1183 = vadd.f32 %v990, %v1182
        %1184 = vmatprep.mubr.bf16.mxu0 %v555
        %1185 = vmatmul.mubr.bf16.gmra.mrb[0].mxu0 %v554
        %v1186 = vpop.f32.mrb[0].mxu0
        %v1187 = vadd.f32 %v994, %v1186
        %v1188 = vpop.f32.mrb[0].mxu0
        %v1189 = vadd.f32 %v996, %v1188
        %v1190 = vpop.f32.mrb[0].mxu0
        %v1191 = vadd.f32 %v998, %v1190
        %v1192 = vpop.f32.mrb[0].mxu0
        %v1193 = vadd.f32 %v1000, %v1192
        %1194 = vmatprep.mubr.bf16.mxu0 %v559
        %1195 = vmatmul.mubr.bf16.gmra.mrb[0].mxu0 %v558
        %v1196 = vpop.f32.mrb[0].mxu0
        %v1197 = vadd.f32 %v1004, %v1196
        %v1198 = vpop.f32.mrb[0].mxu0
        %v1199 = vadd.f32 %v1006, %v1198
        %v1200 = vpop.f32.mrb[0].mxu0
        %v1201 = vadd.f32 %v1008, %v1200
        %v1202 = vpop.f32.mrb[0].mxu0
        %v1203 = vadd.f32 %v1010, %v1202
        %1204 = vmatprep.mubr.bf16.mxu0 %v563
        %1205 = vmatmul.mubr.bf16.gmra.mrb[0].mxu0 %v562
        %v1206 = vpop.f32.mrb[0].mxu0
        %v1207 = vadd.f32 %v1014, %v1206
        %v1208 = vpop.f32.mrb[0].mxu0
        %v1209 = vadd.f32 %v1016, %v1208
        %v1210 = vpop.f32.mrb[0].mxu0
        %v1211 = vadd.f32 %v1018, %v1210
        %v1212 = vpop.f32.mrb[0].mxu0
        %v1213 = vadd.f32 %v1020, %v1212
        %1214 = vmatprep.mubr.bf16.mxu0 %v567
        %1215 = vmatmul.mubr.bf16.gmra.mrb[0].mxu0 %v566
        %v1216 = vpop.f32.mrb[0].mxu0
        %v1217 = vadd.f32 %v1024, %v1216
        %v1218 = vpop.f32.mrb[0].mxu0
        %v1219 = vadd.f32 %v1026, %v1218
        %v1220 = vpop.f32.mrb[0].mxu0
        %v1221 = vadd.f32 %v1028, %v1220
        %v1222 = vpop.f32.mrb[0].mxu0
        %v1223 = vadd.f32 %v1030, %v1222
        %1224 = vmatprep.mubr.bf16.mxu0 %v571
        %1225 = vmatmul.mubr.bf16.gmra.mrb[0].mxu0 %v570
        %v1226 = vpop.f32.mrb[0].mxu0
        %v1227 = vadd.f32 %v1034, %v1226
        %v1228 = vpop.f32.mrb[0].mxu0
        %v1229 = vadd.f32 %v1036, %v1228
        %v1230 = vpop.f32.mrb[0].mxu0
        %v1231 = vadd.f32 %v1038, %v1230
        %v1232 = vpop.f32.mrb[0].mxu0
        %v1233 = vadd.f32 %v1040, %v1232
        %1234 = vmatprep.mubr.bf16.mxu0 %v575
        %1235 = vmatmul.mubr.bf16.gmra.mrb[0].mxu0 %v574
        %v1236 = vpop.f32.mrb[0].mxu0
        %v1237 = vadd.f32 %v1044, %v1236
        %v1238 = vpop.f32.mrb[0].mxu0
        %v1239 = vadd.f32 %v1046, %v1238
        %v1240 = vpop.f32.mrb[0].mxu0
        %v1241 = vadd.f32 %v1048, %v1240
        %v1242 = vpop.f32.mrb[0].mxu0
        %v1243 = vadd.f32 %v1050, %v1242
        %1244 = vmatprep.mubr.bf16.mxu0 %v579
        %1245 = vmatmul.mubr.bf16.gmra.mrb[0].mxu0 %v578
        %v1246 = vpop.f32.mrb[0].mxu0
        %v1247 = vadd.f32 %v1054, %v1246
        %v1248 = vpop.f32.mrb[0].mxu0
        %v1249 = vadd.f32 %v1056, %v1248
        %v1250 = vpop.f32.mrb[0].mxu0
        %v1251 = vadd.f32 %v1058, %v1250
        %v1252 = vpop.f32.mrb[0].mxu0
        %v1253 = vadd.f32 %v1060, %v1252
        %1254 = vmatprep.mubr.bf16.mxu0 %v583
        %1255 = vmatmul.mubr.bf16.gmra.mrb[0].mxu0 %v582
        %v1256 = vpop.f32.mrb[0].mxu0
        %v1257 = vadd.f32 %v1064, %v1256
        %v1258 = vpop.f32.mrb[0].mxu0
        %v1259 = vadd.f32 %v1066, %v1258
        %v1260 = vpop.f32.mrb[0].mxu0
        %v1261 = vadd.f32 %v1068, %v1260
        %v1262 = vpop.f32.mrb[0].mxu0
        %v1263 = vadd.f32 %v1070, %v1262
        %1264 = vmatprep.mubr.bf16.mxu0 %v587
        %1265 = vmatmul.mubr.bf16.gmra.mrb[0].mxu0 %v586
        %v1266 = vpop.f32.mrb[0].mxu0
        %v1267 = vadd.f32 %v1074, %v1266
        %v1268 = vpop.f32.mrb[0].mxu0
        %v1269 = vadd.f32 %v1076, %v1268
        %v1270 = vpop.f32.mrb[0].mxu0
        %v1271 = vadd.f32 %v1078, %v1270
        %v1272 = vpop.f32.mrb[0].mxu0
        %v1273 = vadd.f32 %v1080, %v1272
        %1274 = vmatprep.mubr.bf16.mxu0 %v591
        %1275 = vmatmul.mubr.bf16.gmra.mrb[0].mxu0 %v590
        %v1276 = vpop.f32.mrb[0].mxu0
        %v1277 = vadd.f32 %v1084, %v1276
        %v1278 = vpop.f32.mrb[0].mxu0
        %v1279 = vadd.f32 %v1086, %v1278
        %v1280 = vpop.f32.mrb[0].mxu0
        %v1281 = vadd.f32 %v1088, %v1280
        %v1282 = vpop.f32.mrb[0].mxu0
        %v1283 = vadd.f32 %v1090, %v1282
        %1284 = vmatprep.mubr.bf16.mxu0 %v595
        %1285 = vmatmul.mubr.bf16.gmra.mrb[0].mxu0 %v594
        %v1286 = vpop.f32.mrb[0].mxu0
        %v1287 = vadd.f32 %v1094, %v1286
        %v1288 = vpop.f32.mrb[0].mxu0
        %v1289 = vadd.f32 %v1096, %v1288
        %v1290 = vpop.f32.mrb[0].mxu0
        %v1291 = vadd.f32 %v1098, %v1290
        %v1292 = vpop.f32.mrb[0].mxu0
        %v1293 = vadd.f32 %v1100, %v1292
        %1294 = vmatprep.mubr.bf16.mxu0 %v599
        %1295 = vmatmul.mubr.bf16.gmra.mrb[0].mxu0 %v598
        %v1296 = vpop.f32.mrb[0].mxu0
        %v1297 = vadd.f32 %v1104, %v1296
        %v1298 = vpop.f32.mrb[0].mxu0
        %v1299 = vadd.f32 %v1106, %v1298
        %v1300 = vpop.f32.mrb[0].mxu0
        %v1301 = vadd.f32 %v1108, %v1300
        %v1302 = vpop.f32.mrb[0].mxu0
        %v1303 = vadd.f32 %v1110, %v1302
        %1304 = vmatprep.mubr.bf16.mxu0 %v603
        %1305 = vmatmul.mubr.bf16.gmra.mrb[0].mxu0 %v602
        %v1306 = vpop.f32.mrb[0].mxu0
        %v1307 = vadd.f32 %v1114, %v1306
        %v1308 = vpop.f32.mrb[0].mxu0
        %v1309 = vadd.f32 %v1116, %v1308
        %v1310 = vpop.f32.mrb[0].mxu0
        %v1311 = vadd.f32 %v1118, %v1310
        %v1312 = vpop.f32.mrb[0].mxu0
        %v1313 = vadd.f32 %v1120, %v1312
        %1314 = vdwg.mxu0
        %v1315 = vadd.f32 %v865, %v1157
        %v1316 = vadd.f32 %v866, %v1159
        %v1317 = vadd.f32 %v867, %v1161
        %v1318 = vadd.f32 %v868, %v1163
        %v1319 = vadd.f32 %v869, %v1167
        %v1320 = vadd.f32 %v870, %v1169
        %v1321 = vadd.f32 %v871, %v1171
        %v1322 = vadd.f32 %v872, %v1173
        %v1323 = vadd.f32 %v873, %v1177
        %v1324 = vadd.f32 %v874, %v1179
        %v1325 = vadd.f32 %v875, %v1181
        %v1326 = vadd.f32 %v876, %v1183
        %v1327 = vadd.f32 %v877, %v1187
        %v1328 = vadd.f32 %v878, %v1189
        %v1329 = vadd.f32 %v879, %v1191
        %v1330 = vadd.f32 %v880, %v1193
        %v1331 = vadd.f32 %v881, %v1197
        %v1332 = vadd.f32 %v882, %v1199
        %v1333 = vadd.f32 %v883, %v1201
        %v1334 = vadd.f32 %v884, %v1203
        %v1335 = vadd.f32 %v885, %v1207
        %v1336 = vadd.f32 %v886, %v1209
        %v1337 = vadd.f32 %v887, %v1211
        %v1338 = vadd.f32 %v888, %v1213
        %v1339 = vadd.f32 %v889, %v1217
        %v1340 = vadd.f32 %v890, %v1219
        %v1341 = vadd.f32 %v891, %v1221
        %v1342 = vadd.f32 %v892, %v1223
        %v1343 = vadd.f32 %v893, %v1227
        %v1344 = vadd.f32 %v894, %v1229
        %v1345 = vadd.f32 %v895, %v1231
        %v1346 = vadd.f32 %v896, %v1233
        %v1347 = vadd.f32 %v897, %v1237
        %v1348 = vadd.f32 %v898, %v1239
        %v1349 = vadd.f32 %v899, %v1241
        %v1350 = vadd.f32 %v900, %v1243
        %v1351 = vadd.f32 %v901, %v1247
        %v1352 = vadd.f32 %v902, %v1249
        %v1353 = vadd.f32 %v903, %v1251
        %v1354 = vadd.f32 %v904, %v1253
        %v1355 = vadd.f32 %v905, %v1257
        %v1356 = vadd.f32 %v906, %v1259
        %v1357 = vadd.f32 %v907, %v1261
        %v1358 = vadd.f32 %v908, %v1263
        %v1359 = vadd.f32 %v909, %v1267
        %v1360 = vadd.f32 %v910, %v1269
        %v1361 = vadd.f32 %v911, %v1271
        %v1362 = vadd.f32 %v912, %v1273
        %v1363 = vadd.f32 %v913, %v1277
        %v1364 = vadd.f32 %v914, %v1279
        %v1365 = vadd.f32 %v915, %v1281
        %v1366 = vadd.f32 %v916, %v1283
        %v1367 = vadd.f32 %v917, %v1287
        %v1368 = vadd.f32 %v918, %v1289
        %v1369 = vadd.f32 %v919, %v1291
        %v1370 = vadd.f32 %v920, %v1293
        %v1371 = vadd.f32 %v921, %v1297
        %v1372 = vadd.f32 %v922, %v1299
        %v1373 = vadd.f32 %v923, %v1301
        %v1374 = vadd.f32 %v924, %v1303
        %v1375 = vadd.f32 %v925, %v1307
        %v1376 = vadd.f32 %v926, %v1309
        %v1377 = vadd.f32 %v927, %v1311
        %v1378 = vadd.f32 %v928, %v1313
        %1379 = vst [vmem:[#allocation2] sm:$0xff] %v1315
        %vm1380 = vcmask 588800
        %1381 = vst.msk [vmem:[#allocation2 + $0x8] sm:$0xff] %vm1380, %v1316
        %1382 = vst [vmem:[#allocation2 + $0x10] sm:$0xff] %v1317
        %1383 = vst.msk [vmem:[#allocation2 + $0x18] sm:$0xff] %vm1380, %v1318
        %1384 = vst [vmem:[#allocation2 + $0x20] sm:$0xff] %v1319
        %1385 = vst.msk [vmem:[#allocation2 + $0x28] sm:$0xff] %vm1380, %v1320
        %1386 = vst [vmem:[#allocation2 + $0x30] sm:$0xff] %v1321
        %1387 = vst.msk [vmem:[#allocation2 + $0x38] sm:$0xff] %vm1380, %v1322
        %1388 = vst [vmem:[#allocation2 + $0x40] sm:$0xff] %v1323
        %1389 = vst.msk [vmem:[#allocation2 + $0x48] sm:$0xff] %vm1380, %v1324
        %1390 = vst [vmem:[#allocation2 + $0x50] sm:$0xff] %v1325
        %1391 = vst.msk [vmem:[#allocation2 + $0x58] sm:$0xff] %vm1380, %v1326
        %1392 = vst [vmem:[#allocation2 + $0x60] sm:$0xff] %v1327
        %1393 = vst.msk [vmem:[#allocation2 + $0x68] sm:$0xff] %vm1380, %v1328
        %1394 = vst [vmem:[#allocation2 + $0x70] sm:$0xff] %v1329
        %1395 = vst.msk [vmem:[#allocation2 + $0x78] sm:$0xff] %vm1380, %v1330
        %1396 = vst [vmem:[#allocation2 + $0x80] sm:$0xff] %v1331
        %1397 = vst.msk [vmem:[#allocation2 + $0x88] sm:$0xff] %vm1380, %v1332
        %1398 = vst [vmem:[#allocation2 + $0x90] sm:$0xff] %v1333
        %1399 = vst.msk [vmem:[#allocation2 + $0x98] sm:$0xff] %vm1380, %v1334
        %1400 = vst [vmem:[#allocation2 + $0xa0] sm:$0xff] %v1335
        %1401 = vst.msk [vmem:[#allocation2 + $0xa8] sm:$0xff] %vm1380, %v1336
        %1402 = vst [vmem:[#allocation2 + $0xb0] sm:$0xff] %v1337
        %1403 = vst.msk [vmem:[#allocation2 + $0xb8] sm:$0xff] %vm1380, %v1338
        %1404 = vst [vmem:[#allocation2 + $0xc0] sm:$0xff] %v1339
        %1405 = vst.msk [vmem:[#allocation2 + $0xc8] sm:$0xff] %vm1380, %v1340
        %1406 = vst [vmem:[#allocation2 + $0xd0] sm:$0xff] %v1341
        %1407 = vst.msk [vmem:[#allocation2 + $0xd8] sm:$0xff] %vm1380, %v1342
        %1408 = vst [vmem:[#allocation2 + $0xe0] sm:$0xff] %v1343
        %1409 = vst.msk [vmem:[#allocation2 + $0xe8] sm:$0xff] %vm1380, %v1344
        %1410 = vst [vmem:[#allocation2 + $0xf0] sm:$0xff] %v1345
        %1411 = vst.msk [vmem:[#allocation2 + $0xf8] sm:$0xff] %vm1380, %v1346
        %1412 = vst [vmem:[#allocation2 + $0x100] sm:$0xff] %v1347
        %1413 = vst.msk [vmem:[#allocation2 + $0x108] sm:$0xff] %vm1380, %v1348
        %1414 = vst [vmem:[#allocation2 + $0x110] sm:$0xff] %v1349
        %1415 = vst.msk [vmem:[#allocation2 + $0x118] sm:$0xff] %vm1380, %v1350
        %1416 = vst [vmem:[#allocation2 + $0x120] sm:$0xff] %v1351
        %1417 = vst.msk [vmem:[#allocation2 + $0x128] sm:$0xff] %vm1380, %v1352
        %1418 = vst [vmem:[#allocation2 + $0x130] sm:$0xff] %v1353
        %1419 = vst.msk [vmem:[#allocation2 + $0x138] sm:$0xff] %vm1380, %v1354
        %1420 = vst [vmem:[#allocation2 + $0x140] sm:$0xff] %v1355
        %1421 = vst.msk [vmem:[#allocation2 + $0x148] sm:$0xff] %vm1380, %v1356
        %1422 = vst [vmem:[#allocation2 + $0x150] sm:$0xff] %v1357
        %1423 = vst.msk [vmem:[#allocation2 + $0x158] sm:$0xff] %vm1380, %v1358
        %1424 = vst [vmem:[#allocation2 + $0x160] sm:$0xff] %v1359
        %1425 = vst.msk [vmem:[#allocation2 + $0x168] sm:$0xff] %vm1380, %v1360
        %1426 = vst [vmem:[#allocation2 + $0x170] sm:$0xff] %v1361
        %1427 = vst.msk [vmem:[#allocation2 + $0x178] sm:$0xff] %vm1380, %v1362
        %1428 = vst [vmem:[#allocation2 + $0x180] sm:$0xff] %v1363
        %1429 = vst.msk [vmem:[#allocation2 + $0x188] sm:$0xff] %vm1380, %v1364
        %1430 = vst [vmem:[#allocation2 + $0x190] sm:$0xff] %v1365
        %1431 = vst.msk [vmem:[#allocation2 + $0x198] sm:$0xff] %vm1380, %v1366
        %1432 = vst [vmem:[#allocation2 + $0x1a0] sm:$0xff] %v1367
        %1433 = vst.msk [vmem:[#allocation2 + $0x1a8] sm:$0xff] %vm1380, %v1368
        %1434 = vst [vmem:[#allocation2 + $0x1b0] sm:$0xff] %v1369
        %1435 = vst.msk [vmem:[#allocation2 + $0x1b8] sm:$0xff] %vm1380, %v1370
        %1436 = vst [vmem:[#allocation2 + $0x1c0] sm:$0xff] %v1371
        %1437 = vst.msk [vmem:[#allocation2 + $0x1c8] sm:$0xff] %vm1380, %v1372
        %1438 = vst [vmem:[#allocation2 + $0x1d0] sm:$0xff] %v1373
        %1439 = vst.msk [vmem:[#allocation2 + $0x1d8] sm:$0xff] %vm1380, %v1374
        %1440 = vst [vmem:[#allocation2 + $0x1e0] sm:$0xff] %v1375
        %1441 = vst.msk [vmem:[#allocation2 + $0x1e8] sm:$0xff] %vm1380, %v1376
        %1442 = vst [vmem:[#allocation2 + $0x1f0] sm:$0xff] %v1377
        %1443 = vst.msk [vmem:[#allocation2 + $0x1f8] sm:$0xff] %vm1380, %v1378
        %p1444 = scmp.eq.s32.totalorder %s20, 2
        // Predicated region
        $region63: #{tpu_custom_call.1} parent=53 // pred_check
          %p1445 = pneg %p1444
        $region64: #{tpu_custom_call.1} parent=53 // pred_check_branch
          %1447 = sbr.rel (%p1445) target = $region66
        $region65: #{tpu_custom_call.1} parent=53 // pred_region
          %v1448 = vld [vmem:[#allocation2] sm:$0xff]
          %v1449 = vld [vmem:[#allocation2 + $0x8] sm:$0xff]
          %v1450 = vld [vmem:[#allocation2 + $0x10] sm:$0xff]
          %v1451 = vld [vmem:[#allocation2 + $0x18] sm:$0xff]
          %v1452 = vld [vmem:[#allocation2 + $0x20] sm:$0xff]
          %v1453 = vld [vmem:[#allocation2 + $0x28] sm:$0xff]
          %v1454 = vld [vmem:[#allocation2 + $0x30] sm:$0xff]
          %v1455 = vld [vmem:[#allocation2 + $0x38] sm:$0xff]
          %v1456 = vld [vmem:[#allocation2 + $0x40] sm:$0xff]
          %v1457 = vld [vmem:[#allocation2 + $0x48] sm:$0xff]
          %v1458 = vld [vmem:[#allocation2 + $0x50] sm:$0xff]
          %v1459 = vld [vmem:[#allocation2 + $0x58] sm:$0xff]
          %v1460 = vld [vmem:[#allocation2 + $0x60] sm:$0xff]
          %v1461 = vld [vmem:[#allocation2 + $0x68] sm:$0xff]
          %v1462 = vld [vmem:[#allocation2 + $0x70] sm:$0xff]
          %v1463 = vld [vmem:[#allocation2 + $0x78] sm:$0xff]
          %v1464 = vld [vmem:[#allocation2 + $0x80] sm:$0xff]
          %v1465 = vld [vmem:[#allocation2 + $0x88] sm:$0xff]
          %v1466 = vld [vmem:[#allocation2 + $0x90] sm:$0xff]
          %v1467 = vld [vmem:[#allocation2 + $0x98] sm:$0xff]
          %v1468 = vld [vmem:[#allocation2 + $0xa0] sm:$0xff]
          %v1469 = vld [vmem:[#allocation2 + $0xa8] sm:$0xff]
          %v1470 = vld [vmem:[#allocation2 + $0xb0] sm:$0xff]
          %v1471 = vld [vmem:[#allocation2 + $0xb8] sm:$0xff]
          %v1472 = vld [vmem:[#allocation2 + $0xc0] sm:$0xff]
          %v1473 = vld [vmem:[#allocation2 + $0xc8] sm:$0xff]
          %v1474 = vld [vmem:[#allocation2 + $0xd0] sm:$0xff]
          %v1475 = vld [vmem:[#allocation2 + $0xd8] sm:$0xff]
          %v1476 = vld [vmem:[#allocation2 + $0xe0] sm:$0xff]
          %v1477 = vld [vmem:[#allocation2 + $0xe8] sm:$0xff]
          %v1478 = vld [vmem:[#allocation2 + $0xf0] sm:$0xff]
          %v1479 = vld [vmem:[#allocation2 + $0xf8] sm:$0xff]
          %v1480 = vld [vmem:[#allocation2 + $0x100] sm:$0xff]
          %v1481 = vld [vmem:[#allocation2 + $0x108] sm:$0xff]
          %v1482 = vld [vmem:[#allocation2 + $0x110] sm:$0xff]
          %v1483 = vld [vmem:[#allocation2 + $0x118] sm:$0xff]
          %v1484 = vld [vmem:[#allocation2 + $0x120] sm:$0xff]
          %v1485 = vld [vmem:[#allocation2 + $0x128] sm:$0xff]
          %v1486 = vld [vmem:[#allocation2 + $0x130] sm:$0xff]
          %v1487 = vld [vmem:[#allocation2 + $0x138] sm:$0xff]
          %v1488 = vld [vmem:[#allocation2 + $0x140] sm:$0xff]
          %v1489 = vld [vmem:[#allocation2 + $0x148] sm:$0xff]
          %v1490 = vld [vmem:[#allocation2 + $0x150] sm:$0xff]
          %v1491 = vld [vmem:[#allocation2 + $0x158] sm:$0xff]
          %v1492 = vld [vmem:[#allocation2 + $0x160] sm:$0xff]
          %v1493 = vld [vmem:[#allocation2 + $0x168] sm:$0xff]
          %v1494 = vld [vmem:[#allocation2 + $0x170] sm:$0xff]
          %v1495 = vld [vmem:[#allocation2 + $0x178] sm:$0xff]
          %v1496 = vld [vmem:[#allocation2 + $0x180] sm:$0xff]
          %v1497 = vld [vmem:[#allocation2 + $0x188] sm:$0xff]
          %v1498 = vld [vmem:[#allocation2 + $0x190] sm:$0xff]
          %v1499 = vld [vmem:[#allocation2 + $0x198] sm:$0xff]
          %v1500 = vld [vmem:[#allocation2 + $0x1a0] sm:$0xff]
          %v1501 = vld [vmem:[#allocation2 + $0x1a8] sm:$0xff]
          %v1502 = vld [vmem:[#allocation2 + $0x1b0] sm:$0xff]
          %v1503 = vld [vmem:[#allocation2 + $0x1b8] sm:$0xff]
          %v1504 = vld [vmem:[#allocation2 + $0x1c0] sm:$0xff]
          %v1505 = vld [vmem:[#allocation2 + $0x1c8] sm:$0xff]
          %v1506 = vld [vmem:[#allocation2 + $0x1d0] sm:$0xff]
          %v1507 = vld [vmem:[#allocation2 + $0x1d8] sm:$0xff]
          %v1508 = vld [vmem:[#allocation2 + $0x1e0] sm:$0xff]
          %v1509 = vld [vmem:[#allocation2 + $0x1e8] sm:$0xff]
          %v1510 = vld [vmem:[#allocation2 + $0x1f0] sm:$0xff]
          %v1511 = vld [vmem:[#allocation2 + $0x1f8] sm:$0xff]
          %1512 = vst [vmem:[%s385] sm:$0xff] %v1448
          %1513 = vst.msk [vmem:[%s385 + $0x8] sm:$0xff] %vm1380, %v1449
          %1514 = vst [vmem:[%s385 + $0x10] sm:$0xff] %v1450
          %1515 = vst.msk [vmem:[%s385 + $0x18] sm:$0xff] %vm1380, %v1451
          %1516 = vst [vmem:[%s385 + $0x20] sm:$0xff] %v1452
          %1517 = vst.msk [vmem:[%s385 + $0x28] sm:$0xff] %vm1380, %v1453
          %1518 = vst [vmem:[%s385 + $0x30] sm:$0xff] %v1454
          %1519 = vst.msk [vmem:[%s385 + $0x38] sm:$0xff] %vm1380, %v1455
          %1520 = vst [vmem:[%s385 + $0x40] sm:$0xff] %v1456
          %1521 = vst.msk [vmem:[%s385 + $0x48] sm:$0xff] %vm1380, %v1457
          %1522 = vst [vmem:[%s385 + $0x50] sm:$0xff] %v1458
          %1523 = vst.msk [vmem:[%s385 + $0x58] sm:$0xff] %vm1380, %v1459
          %1524 = vst [vmem:[%s385 + $0x60] sm:$0xff] %v1460
          %1525 = vst.msk [vmem:[%s385 + $0x68] sm:$0xff] %vm1380, %v1461
          %1526 = vst [vmem:[%s385 + $0x70] sm:$0xff] %v1462
          %1527 = vst.msk [vmem:[%s385 + $0x78] sm:$0xff] %vm1380, %v1463
          %1528 = vst [vmem:[%s385 + $0x80] sm:$0xff] %v1464
          %1529 = vst.msk [vmem:[%s385 + $0x88] sm:$0xff] %vm1380, %v1465
          %1530 = vst [vmem:[%s385 + $0x90] sm:$0xff] %v1466
          %1531 = vst.msk [vmem:[%s385 + $0x98] sm:$0xff] %vm1380, %v1467
          %1532 = vst [vmem:[%s385 + $0xa0] sm:$0xff] %v1468
          %1533 = vst.msk [vmem:[%s385 + $0xa8] sm:$0xff] %vm1380, %v1469
          %1534 = vst [vmem:[%s385 + $0xb0] sm:$0xff] %v1470
          %1535 = vst.msk [vmem:[%s385 + $0xb8] sm:$0xff] %vm1380, %v1471
          %1536 = vst [vmem:[%s385 + $0xc0] sm:$0xff] %v1472
          %1537 = vst.msk [vmem:[%s385 + $0xc8] sm:$0xff] %vm1380, %v1473
          %1538 = vst [vmem:[%s385 + $0xd0] sm:$0xff] %v1474
          %1539 = vst.msk [vmem:[%s385 + $0xd8] sm:$0xff] %vm1380, %v1475
          %1540 = vst [vmem:[%s385 + $0xe0] sm:$0xff] %v1476
          %1541 = vst.msk [vmem:[%s385 + $0xe8] sm:$0xff] %vm1380, %v1477
          %1542 = vst [vmem:[%s385 + $0xf0] sm:$0xff] %v1478
          %1543 = vst.msk [vmem:[%s385 + $0xf8] sm:$0xff] %vm1380, %v1479
          %1544 = vst [vmem:[%s385 + $0x100] sm:$0xff] %v1480
          %1545 = vst.msk [vmem:[%s385 + $0x108] sm:$0xff] %vm1380, %v1481
          %1546 = vst [vmem:[%s385 + $0x110] sm:$0xff] %v1482
          %1547 = vst.msk [vmem:[%s385 + $0x118] sm:$0xff] %vm1380, %v1483
          %1548 = vst [vmem:[%s385 + $0x120] sm:$0xff] %v1484
          %1549 = vst.msk [vmem:[%s385 + $0x128] sm:$0xff] %vm1380, %v1485
          %1550 = vst [vmem:[%s385 + $0x130] sm:$0xff] %v1486
          %1551 = vst.msk [vmem:[%s385 + $0x138] sm:$0xff] %vm1380, %v1487
          %1552 = vst [vmem:[%s385 + $0x140] sm:$0xff] %v1488
          %1553 = vst.msk [vmem:[%s385 + $0x148] sm:$0xff] %vm1380, %v1489
          %1554 = vst [vmem:[%s385 + $0x150] sm:$0xff] %v1490
          %1555 = vst.msk [vmem:[%s385 + $0x158] sm:$0xff] %vm1380, %v1491
          %1556 = vst [vmem:[%s385 + $0x160] sm:$0xff] %v1492
          %1557 = vst.msk [vmem:[%s385 + $0x168] sm:$0xff] %vm1380, %v1493
          %1558 = vst [vmem:[%s385 + $0x170] sm:$0xff] %v1494
          %1559 = vst.msk [vmem:[%s385 + $0x178] sm:$0xff] %vm1380, %v1495
          %1560 = vst [vmem:[%s385 + $0x180] sm:$0xff] %v1496
          %1561 = vst.msk [vmem:[%s385 + $0x188] sm:$0xff] %vm1380, %v1497
          %1562 = vst [vmem:[%s385 + $0x190] sm:$0xff] %v1498
          %1563 = vst.msk [vmem:[%s385 + $0x198] sm:$0xff] %vm1380, %v1499
          %1564 = vst [vmem:[%s385 + $0x1a0] sm:$0xff] %v1500
          %1565 = vst.msk [vmem:[%s385 + $0x1a8] sm:$0xff] %vm1380, %v1501
          %1566 = vst [vmem:[%s385 + $0x1b0] sm:$0xff] %v1502
          %1567 = vst.msk [vmem:[%s385 + $0x1b8] sm:$0xff] %vm1380, %v1503
          %1568 = vst [vmem:[%s385 + $0x1c0] sm:$0xff] %v1504
          %1569 = vst.msk [vmem:[%s385 + $0x1c8] sm:$0xff] %vm1380, %v1505
          %1570 = vst [vmem:[%s385 + $0x1d0] sm:$0xff] %v1506
          %1571 = vst.msk [vmem:[%s385 + $0x1d8] sm:$0xff] %vm1380, %v1507
          %1572 = vst [vmem:[%s385 + $0x1e0] sm:$0xff] %v1508
          %1573 = vst.msk [vmem:[%s385 + $0x1e8] sm:$0xff] %vm1380, %v1509
          %1574 = vst [vmem:[%s385 + $0x1f0] sm:$0xff] %v1510
          %1575 = vst.msk [vmem:[%s385 + $0x1f8] sm:$0xff] %vm1380, %v1511
        $region66: #{tpu_custom_call.1} parent=53 // pred_fallthru
          _
        %s1576 = sand.u32 %s98, 1
        %s1577 = sand.u32 %s98, 1
        %s1578 = smul.addr %s1577, 512
        %s1579 = scalar_lea.vmem [#allocation4], %s1578
        // Predicated region
        $region67: #{tpu_custom_call.1} parent=53 // pred_check
          %p1580 = pneg %p108
        $region68: #{tpu_custom_call.1} parent=53 // pred_check_branch
          %1582 = sbr.rel (%p1580) target = $region70
        $region69: #{tpu_custom_call.1} parent=53 // pred_region
          %s1583 = smul.u32 32, %s18
          %s1584 = smul.u32 2, %s19
          %s1585 = ssub.s32 38, %s1583
          %p1586 = scmp.lt.s32.totalorder %s1585, 32
          %s1587 = scalar_select %p1586, %s1585, 32
          %s1588 = smul.u32 128, %s1587
          %s1589 = smul.u32 %s1588, 2
          %p1590 = scmp.ne.s32.totalorder 0, %s1589
          %s1591 = smul.addr %s1583, 2
          %s1592 = sadd.s32 %s1584, %s1591
          %s1593 = smul.addr %s1592, 8
          %s1594 = scalar_lea.vmem %s2, %s1593
          // Predicated region
          $region71: #{tpu_custom_call.1} parent=69 // pred_check
            %p1595 = pneg %p1590
          $region72: #{tpu_custom_call.1} parent=69 // pred_check_branch
            %1597 = sbr.rel (%p1595) target = $region74
          $region73: #{tpu_custom_call.1} parent=69 // pred_region
            // Predicated region
            $region75: #{tpu_custom_call.1} parent=73 // pred_check
              _
            $region76: #{tpu_custom_call.1} parent=73 // pred_check_branch
              %1599 = sbr.rel (0) target = $region78
            $region77: #{tpu_custom_call.1} parent=73 // pred_region
              %s1600 = sshrl.u32 %s1587, 5
              // While loop
              $region79: #{tpu_custom_call.1} parent=77 // loop_pre_header
                _
              $region80: #{tpu_custom_call.1} parent=77 // loop_header
                %s1602 = sphi 0, %s1604
                %p1603 = scmp.ge.s32.totalorder %s1602, %s1600
                %s1607 = sphi 0, %s1740
                %s1608 = sphi %s1579, %s1743
                %s1609 = sphi %s1594, %s1744
              $region81: #{tpu_custom_call.1} parent=77 // loop_header_branch
                %1606 = sbr.rel (%p1603) target = $region85
              $region82: #{tpu_custom_call.1} parent=77 // loop_body
                %v1610 = vld [vmem:[%s1608] sm:$0xff]
                %1611 = vst [vmem:[%s1609] sm:$0xff] %v1610
                %v1612 = vld [vmem:[%s1608 + $0x10] sm:$0xff]
                %1613 = vst [vmem:[%s1609 + $0x10] sm:$0xff] %v1612
                %v1614 = vld [vmem:[%s1608 + $0x20] sm:$0xff]
                %1615 = vst [vmem:[%s1609 + $0x20] sm:$0xff] %v1614
                %v1616 = vld [vmem:[%s1608 + $0x30] sm:$0xff]
                %1617 = vst [vmem:[%s1609 + $0x30] sm:$0xff] %v1616
                %v1618 = vld [vmem:[%s1608 + $0x40] sm:$0xff]
                %1619 = vst [vmem:[%s1609 + $0x40] sm:$0xff] %v1618
                %v1620 = vld [vmem:[%s1608 + $0x50] sm:$0xff]
                %1621 = vst [vmem:[%s1609 + $0x50] sm:$0xff] %v1620
                %v1622 = vld [vmem:[%s1608 + $0x60] sm:$0xff]
                %1623 = vst [vmem:[%s1609 + $0x60] sm:$0xff] %v1622
                %v1624 = vld [vmem:[%s1608 + $0x70] sm:$0xff]
                %1625 = vst [vmem:[%s1609 + $0x70] sm:$0xff] %v1624
                %v1626 = vld [vmem:[%s1608 + $0x80] sm:$0xff]
                %1627 = vst [vmem:[%s1609 + $0x80] sm:$0xff] %v1626
                %v1628 = vld [vmem:[%s1608 + $0x90] sm:$0xff]
                %1629 = vst [vmem:[%s1609 + $0x90] sm:$0xff] %v1628
                %v1630 = vld [vmem:[%s1608 + $0xa0] sm:$0xff]
                %1631 = vst [vmem:[%s1609 + $0xa0] sm:$0xff] %v1630
                %v1632 = vld [vmem:[%s1608 + $0xb0] sm:$0xff]
                %1633 = vst [vmem:[%s1609 + $0xb0] sm:$0xff] %v1632
                %v1634 = vld [vmem:[%s1608 + $0xc0] sm:$0xff]
                %1635 = vst [vmem:[%s1609 + $0xc0] sm:$0xff] %v1634
                %v1636 = vld [vmem:[%s1608 + $0xd0] sm:$0xff]
                %1637 = vst [vmem:[%s1609 + $0xd0] sm:$0xff] %v1636
                %v1638 = vld [vmem:[%s1608 + $0xe0] sm:$0xff]
                %1639 = vst [vmem:[%s1609 + $0xe0] sm:$0xff] %v1638
                %v1640 = vld [vmem:[%s1608 + $0xf0] sm:$0xff]
                %1641 = vst [vmem:[%s1609 + $0xf0] sm:$0xff] %v1640
                %v1642 = vld [vmem:[%s1608 + $0x100] sm:$0xff]
                %1643 = vst [vmem:[%s1609 + $0x100] sm:$0xff] %v1642
                %v1644 = vld [vmem:[%s1608 + $0x110] sm:$0xff]
                %1645 = vst [vmem:[%s1609 + $0x110] sm:$0xff] %v1644
                %v1646 = vld [vmem:[%s1608 + $0x120] sm:$0xff]
                %1647 = vst [vmem:[%s1609 + $0x120] sm:$0xff] %v1646
                %v1648 = vld [vmem:[%s1608 + $0x130] sm:$0xff]
                %1649 = vst [vmem:[%s1609 + $0x130] sm:$0xff] %v1648
                %v1650 = vld [vmem:[%s1608 + $0x140] sm:$0xff]
                %1651 = vst [vmem:[%s1609 + $0x140] sm:$0xff] %v1650
                %v1652 = vld [vmem:[%s1608 + $0x150] sm:$0xff]
                %1653 = vst [vmem:[%s1609 + $0x150] sm:$0xff] %v1652
                %v1654 = vld [vmem:[%s1608 + $0x160] sm:$0xff]
                %1655 = vst [vmem:[%s1609 + $0x160] sm:$0xff] %v1654
                %v1656 = vld [vmem:[%s1608 + $0x170] sm:$0xff]
                %1657 = vst [vmem:[%s1609 + $0x170] sm:$0xff] %v1656
                %v1658 = vld [vmem:[%s1608 + $0x180] sm:$0xff]
                %1659 = vst [vmem:[%s1609 + $0x180] sm:$0xff] %v1658
                %v1660 = vld [vmem:[%s1608 + $0x190] sm:$0xff]
                %1661 = vst [vmem:[%s1609 + $0x190] sm:$0xff] %v1660
                %v1662 = vld [vmem:[%s1608 + $0x1a0] sm:$0xff]
                %1663 = vst [vmem:[%s1609 + $0x1a0] sm:$0xff] %v1662
                %v1664 = vld [vmem:[%s1608 + $0x1b0] sm:$0xff]
                %1665 = vst [vmem:[%s1609 + $0x1b0] sm:$0xff] %v1664
                %v1666 = vld [vmem:[%s1608 + $0x1c0] sm:$0xff]
                %1667 = vst [vmem:[%s1609 + $0x1c0] sm:$0xff] %v1666
                %v1668 = vld [vmem:[%s1608 + $0x1d0] sm:$0xff]
                %1669 = vst [vmem:[%s1609 + $0x1d0] sm:$0xff] %v1668
                %v1670 = vld [vmem:[%s1608 + $0x1e0] sm:$0xff]
                %1671 = vst [vmem:[%s1609 + $0x1e0] sm:$0xff] %v1670
                %v1672 = vld [vmem:[%s1608 + $0x1f0] sm:$0xff]
                %1673 = vst [vmem:[%s1609 + $0x1f0] sm:$0xff] %v1672
                %v1674 = vld [vmem:[%s1608 + $0x8] sm:$0xff]
                %1675 = vst [vmem:[%s1609 + $0x8] sm:$0xff] %v1674
                %v1676 = vld [vmem:[%s1608 + $0x18] sm:$0xff]
                %1677 = vst [vmem:[%s1609 + $0x18] sm:$0xff] %v1676
                %v1678 = vld [vmem:[%s1608 + $0x28] sm:$0xff]
                %1679 = vst [vmem:[%s1609 + $0x28] sm:$0xff] %v1678
                %v1680 = vld [vmem:[%s1608 + $0x38] sm:$0xff]
                %1681 = vst [vmem:[%s1609 + $0x38] sm:$0xff] %v1680
                %v1682 = vld [vmem:[%s1608 + $0x48] sm:$0xff]
                %1683 = vst [vmem:[%s1609 + $0x48] sm:$0xff] %v1682
                %v1684 = vld [vmem:[%s1608 + $0x58] sm:$0xff]
                %1685 = vst [vmem:[%s1609 + $0x58] sm:$0xff] %v1684
                %v1686 = vld [vmem:[%s1608 + $0x68] sm:$0xff]
                %1687 = vst [vmem:[%s1609 + $0x68] sm:$0xff] %v1686
                %v1688 = vld [vmem:[%s1608 + $0x78] sm:$0xff]
                %1689 = vst [vmem:[%s1609 + $0x78] sm:$0xff] %v1688
                %v1690 = vld [vmem:[%s1608 + $0x88] sm:$0xff]
                %1691 = vst [vmem:[%s1609 + $0x88] sm:$0xff] %v1690
                %v1692 = vld [vmem:[%s1608 + $0x98] sm:$0xff]
                %1693 = vst [vmem:[%s1609 + $0x98] sm:$0xff] %v1692
                %v1694 = vld [vmem:[%s1608 + $0xa8] sm:$0xff]
                %1695 = vst [vmem:[%s1609 + $0xa8] sm:$0xff] %v1694
                %v1696 = vld [vmem:[%s1608 + $0xb8] sm:$0xff]
                %1697 = vst [vmem:[%s1609 + $0xb8] sm:$0xff] %v1696
                %v1698 = vld [vmem:[%s1608 + $0xc8] sm:$0xff]
                %1699 = vst [vmem:[%s1609 + $0xc8] sm:$0xff] %v1698
                %v1700 = vld [vmem:[%s1608 + $0xd8] sm:$0xff]
                %1701 = vst [vmem:[%s1609 + $0xd8] sm:$0xff] %v1700
                %v1702 = vld [vmem:[%s1608 + $0xe8] sm:$0xff]
                %1703 = vst [vmem:[%s1609 + $0xe8] sm:$0xff] %v1702
                %v1704 = vld [vmem:[%s1608 + $0xf8] sm:$0xff]
                %1705 = vst [vmem:[%s1609 + $0xf8] sm:$0xff] %v1704
                %v1706 = vld [vmem:[%s1608 + $0x108] sm:$0xff]
                %1707 = vst [vmem:[%s1609 + $0x108] sm:$0xff] %v1706
                %v1708 = vld [vmem:[%s1608 + $0x118] sm:$0xff]
                %1709 = vst [vmem:[%s1609 + $0x118] sm:$0xff] %v1708
                %v1710 = vld [vmem:[%s1608 + $0x128] sm:$0xff]
                %1711 = vst [vmem:[%s1609 + $0x128] sm:$0xff] %v1710
                %v1712 = vld [vmem:[%s1608 + $0x138] sm:$0xff]
                %1713 = vst [vmem:[%s1609 + $0x138] sm:$0xff] %v1712
                %v1714 = vld [vmem:[%s1608 + $0x148] sm:$0xff]
                %1715 = vst [vmem:[%s1609 + $0x148] sm:$0xff] %v1714
                %v1716 = vld [vmem:[%s1608 + $0x158] sm:$0xff]
                %1717 = vst [vmem:[%s1609 + $0x158] sm:$0xff] %v1716
                %v1718 = vld [vmem:[%s1608 + $0x168] sm:$0xff]
                %1719 = vst [vmem:[%s1609 + $0x168] sm:$0xff] %v1718
                %v1720 = vld [vmem:[%s1608 + $0x178] sm:$0xff]
                %1721 = vst [vmem:[%s1609 + $0x178] sm:$0xff] %v1720
                %v1722 = vld [vmem:[%s1608 + $0x188] sm:$0xff]
                %1723 = vst [vmem:[%s1609 + $0x188] sm:$0xff] %v1722
                %v1724 = vld [vmem:[%s1608 + $0x198] sm:$0xff]
                %1725 = vst [vmem:[%s1609 + $0x198] sm:$0xff] %v1724
                %v1726 = vld [vmem:[%s1608 + $0x1a8] sm:$0xff]
                %1727 = vst [vmem:[%s1609 + $0x1a8] sm:$0xff] %v1726
                %v1728 = vld [vmem:[%s1608 + $0x1b8] sm:$0xff]
                %1729 = vst [vmem:[%s1609 + $0x1b8] sm:$0xff] %v1728
                %v1730 = vld [vmem:[%s1608 + $0x1c8] sm:$0xff]
                %1731 = vst [vmem:[%s1609 + $0x1c8] sm:$0xff] %v1730
                %v1732 = vld [vmem:[%s1608 + $0x1d8] sm:$0xff]
                %1733 = vst [vmem:[%s1609 + $0x1d8] sm:$0xff] %v1732
                %v1734 = vld [vmem:[%s1608 + $0x1e8] sm:$0xff]
                %1735 = vst [vmem:[%s1609 + $0x1e8] sm:$0xff] %v1734
                %v1736 = vld [vmem:[%s1608 + $0x1f8] sm:$0xff]
                %1737 = vst [vmem:[%s1609 + $0x1f8] sm:$0xff] %v1736
                %s1738 = sadd.s32 1, %s1607
                %p1739 = scmp.ge.s32.totalorder %s1738, %s1600
                %s1740 = scalar_select %p1739, 0, %s1738
                %s1741 = smul.u32 %s1740, 512
                %s1742 = smul.u32 %s1740, 512
                %s1743 = scalar_lea.vmem %s1579, %s1741 [#allocation4]
                %s1744 = scalar_lea.vmem %s1594, %s1742
              $region83: #{tpu_custom_call.1} parent=77 // loop_footer
                %s1604 = sadd.s32 %s1602, 1
              $region84: #{tpu_custom_call.1} parent=77 // loop_footer_branch
                %1601 = sbr.rel target = $region80
              $region85: #{tpu_custom_call.1} parent=77 // loop_exit
                _
              %s1745 = sshrl.u32 %s1587, 5
              %s1746 = sand.u32 %s1587, 31
              %s1747 = smul.u32 %s1745, 32
              %s1748 = smul.u32 16, %s1747
              %s1749 = scalar_lea.vmem %s1579, %s1748 [#allocation4]
              %s1750 = smul.u32 16, %s1747
              %s1751 = scalar_lea.vmem %s1594, %s1750
              // While loop
              $region86: #{tpu_custom_call.1} parent=77 // loop_pre_header
                _
              $region87: #{tpu_custom_call.1} parent=77 // loop_header
                %s1753 = sphi 0, %s1755
                %p1754 = scmp.ge.s32.totalorder %s1753, %s1746
                %s1758 = sphi 0, %s1767
                %s1759 = sphi %s1749, %s1770
                %s1760 = sphi %s1751, %s1771
              $region88: #{tpu_custom_call.1} parent=77 // loop_header_branch
                %1757 = sbr.rel (%p1754) target = $region92
              $region89: #{tpu_custom_call.1} parent=77 // loop_body
                %v1761 = vld [vmem:[%s1759] sm:$0xff]
                %1762 = vst [vmem:[%s1760] sm:$0xff] %v1761
                %v1763 = vld [vmem:[%s1759 + $0x8] sm:$0xff]
                %1764 = vst [vmem:[%s1760 + $0x8] sm:$0xff] %v1763
                %s1765 = sadd.s32 1, %s1758
                %p1766 = scmp.ge.s32.totalorder %s1765, %s1746
                %s1767 = scalar_select %p1766, 0, %s1765
                %s1768 = smul.u32 %s1767, 16
                %s1769 = smul.u32 %s1767, 16
                %s1770 = scalar_lea.vmem %s1749, %s1768 [#allocation4]
                %s1771 = scalar_lea.vmem %s1751, %s1769
              $region90: #{tpu_custom_call.1} parent=77 // loop_footer
                %s1755 = sadd.s32 %s1753, 1
              $region91: #{tpu_custom_call.1} parent=77 // loop_footer_branch
                %1752 = sbr.rel target = $region87
              $region92: #{tpu_custom_call.1} parent=77 // loop_exit
                _
            $region78: #{tpu_custom_call.1} parent=73 // pred_fallthru
              _
            // Predicated region
            $region93: #{tpu_custom_call.1} parent=73 // pred_check
              _
            $region94: #{tpu_custom_call.1} parent=73 // pred_check_branch
              %1773 = sbr.rel target = $region96
            $region95: #{tpu_custom_call.1} parent=73 // pred_region
              _
            $region96: #{tpu_custom_call.1} parent=73 // pred_fallthru
              _
          $region74: #{tpu_custom_call.1} parent=69 // pred_fallthru
            _
          %1774 = vnop
        $region70: #{tpu_custom_call.1} parent=53 // pred_fallthru
          _
      $region54: #{tpu_custom_call.1} parent=5 // pred_fallthru
        _
      %p1775 = scmp.le.s32.totalorder 2, %s8
      // Predicated region
      $region97: #{tpu_custom_call.1} parent=5 // pred_check
        %p1776 = pneg %p1775
      $region98: #{tpu_custom_call.1} parent=5 // pred_check_branch
        %1778 = sbr.rel (%p1776) target = $region100
      $region99: #{tpu_custom_call.1} parent=5 // pred_region
        %s1779 = ssub.s32 %s8, 2
        // Predicated region
        $region101: #{tpu_custom_call.1} parent=99 // pred_check
          %p1780 = pneg %p114
        $region102: #{tpu_custom_call.1} parent=99 // pred_check_branch
          %1782 = sbr.rel (%p1780) target = $region104
        $region103: #{tpu_custom_call.1} parent=99 // pred_region
          %s1783 = sand.u32 %s99, 1
          %s1784 = sand.u32 %s99, 1
          %s1785 = smul.addr %s1784, 512
          %s1786 = scalar_lea.vmem [#allocation4], %s1785
        $region104: #{tpu_custom_call.1} parent=99 // pred_fallthru
          _
      $region100: #{tpu_custom_call.1} parent=5 // pred_fallthru
        _
    $region6: #{tpu_custom_call.1} parent=1 // loop_footer
      %s12 = sadd.s32 1, %s8
    $region7: #{tpu_custom_call.1} parent=1 // loop_footer_branch
      %7 = sbr.rel target = $region3
    $region8: #{tpu_custom_call.1} parent=1 // loop_exit
      _

</llo_original>
